<compile_context>
chip_gen: v6e
topology: v6e:2x2x1
jax: 0.10.0
libtpu: 0.0.40
codegen_flags: <defaults>
</compile_context>

<pallas_src>
import functools

import jax
import jax.numpy as jnp
from jax.experimental import pallas as pl
from jax.experimental.pallas import tpu as pltpu

IN_DIM = 1280          # multiple of 128 already
LANE = 128
LN_EPS = 1e-5


def _round_up(v, m):
    return ((v + m - 1) // m) * m


def _pad_axis(a, axis, new_size):
    pad = new_size - a.shape[axis]
    if pad == 0:
        return a
    widths = [(0, 0)] * a.ndim
    widths[axis] = (0, pad)
    return jnp.pad(a, widths)


def _physical_vmem_bytes():
    """Best-effort per-core VMEM capacity; safe 64 MiB fallback (valid on all gens)."""
    try:
        info = pltpu.get_tpu_info()
        cap = getattr(info, "vmem_capacity_bytes", None)
        if cap:
            return int(cap)
    except Exception:
        pass
    return 64 << 20


# -----------------------------------------------------------------------------
# Kernel
# -----------------------------------------------------------------------------
def layernormnet_kernel(x_ref,
                        w1_ref, b1_ref, g1_ref, be1_ref,
                        w2_ref, b2_ref, g2_ref, be2_ref,
                        w3_ref, b3_ref,
                        o_ref, *, h_real):
    cdt = w1_ref.dtype                      # MXU input dtype (bf16)
    inv_h = 1.0 / float(h_real)

    def layernorm(h, gamma, beta):
        # Padded columns of h are exactly zero (zero weight cols + zero bias), so the
        # unmasked sums over H_pad equal the sums over the real H columns.
        # One-pass statistics: var = E[h^2] - mu^2 (f32, clamped for cancellation).
        mu = jnp.sum(h, axis=-1, keepdims=True) * inv_h
        var = jnp.maximum(
            jnp.sum(h * h, axis=-1, keepdims=True) * inv_h - mu * mu, 0.0)
        # gamma/beta are zero on padded columns -> padded outputs stay exactly 0.
        return (h - mu) * jax.lax.rsqrt(var + LN_EPS) * gamma + beta

    x = x_ref[...].astype(cdt)

    # fc1 -> ln1 -> dropout (identity, eval mode) -> relu   (bf16 MXU, f32 accumulate)
    h = jnp.dot(x, w1_ref[...], preferred_element_type=jnp.float32) + b1_ref[...]
    h = jnp.maximum(layernorm(h, g1_ref[...], be1_ref[...]), 0.0)

    # fc2 -> ln2 -> dropout (identity) -> relu
    h = jnp.dot(h.astype(cdt), w2_ref[...],
                preferred_element_type=jnp.float32) + b2_ref[...]
    h = jnp.maximum(layernorm(h, g2_ref[...], be2_ref[...]), 0.0)

    # fc3
    y = jnp.dot(h.astype(cdt), w3_ref[...],
                preferred_element_type=jnp.float32) + b3_ref[...]
    o_ref[...] = y.astype(o_ref.dtype)


# -----------------------------------------------------------------------------
# Wrapper
# -----------------------------------------------------------------------------
def layernormnet_forward(x, params, *, batch_tile=None):
    """x: [N, 1280] float32 (bf16 also accepted). params: dict of weights (see init_params)."""
    N, D = x.shape
    assert D == IN_DIM
    H = params["w1"].shape[1]
    O = params["w3"].shape[1]
    H_pad = _round_up(H, LANE)
    O_pad = _round_up(O, LANE)

    # Batch tile policy: big tiles when N is large (HBM roofline / MXU occupancy),
    # never below 64 rows just to manufacture a multi-step grid.
    if batch_tile is None:
        batch_tile = 512 if N >= 1024 else 256
        while batch_tile > 64 and pl.cdiv(N, batch_tile) < 2:
            batch_tile //= 2
    assert batch_tile % 8 == 0
    N_pad = _round_up(N, batch_tile)

    x_p = _pad_axis(x, 0, N_pad)

    # Zero-pad features to lane-dense (128-multiple) shapes. Zero padding keeps
    # the math identical (see kernel comments) and the wrapper slices it off.
    w1 = _pad_axis(params["w1"], 1, H_pad)
    b1 = _pad_axis(params["b1"], 1, H_pad)
    g1 = _pad_axis(params["g1"], 1, H_pad)
    be1 = _pad_axis(params["be1"], 1, H_pad)
    w2 = _pad_axis(_pad_axis(params["w2"], 0, H_pad), 1, H_pad)
    b2 = _pad_axis(params["b2"], 1, H_pad)
    g2 = _pad_axis(params["g2"], 1, H_pad)
    be2 = _pad_axis(params["be2"], 1, H_pad)
    w3 = _pad_axis(_pad_axis(params["w3"], 0, H_pad), 1, O_pad)
    b3 = _pad_axis(params["b3"], 1, O_pad)
    weights = [w1, b1, g1, be1, w2, b2, g2, be2, w3, b3]

    def full_spec(a):
        # Constant block index across the grid -> single-buffer (no benefit from 2x).
        nd = a.ndim
        idx = lambda i, _nd=nd: (0,) * _nd
        try:
            return pl.BlockSpec(a.shape, idx, pipeline_mode=pl.Buffered(1))
        except TypeError:
            return pl.BlockSpec(a.shape, idx)

    in_specs = ([pl.BlockSpec((batch_tile, IN_DIM), lambda i: (i, 0))]
                + [full_spec(a) for a in weights])
    out_spec = pl.BlockSpec((batch_tile, O_pad), lambda i: (i, 0))

    # Scheduler hint.
    flops = 2 * N_pad * (IN_DIM * H_pad + H_pad * H_pad + H_pad * O_pad)
    weight_bytes = sum(a.size * a.dtype.itemsize for a in weights)
    bytes_accessed = (x_p.size * x_p.dtype.itemsize
                      + weight_bytes
                      + N_pad * O_pad * x.dtype.itemsize)
    cost = pl.CostEstimate(flops=int(flops),
                           transcendentals=int(2 * N_pad),   # two rsqrt per row
                           bytes_accessed=int(bytes_accessed))

    # VMEM budget: double-buffered x/out tiles + single-buffered weights + headroom
    # for f32 intermediates. Cap is generation-aware (80% of physical per-core VMEM).
    vmem_est = (2 * batch_tile * IN_DIM * x.dtype.itemsize
                + 2 * batch_tile * O_pad * x.dtype.itemsize
                + weight_bytes
                + 6 * batch_tile * max(IN_DIM, H_pad) * 4)
    vmem_cap = int(_physical_vmem_bytes() * 0.8)
    vmem_limit = int(min(vmem_cap, max(16 << 20, int(vmem_est * 1.25))))

    out_padded = pl.pallas_call(
        functools.partial(layernormnet_kernel, h_real=H),
        out_shape=jax.ShapeDtypeStruct((N_pad, O_pad), x.dtype),
        grid_spec=pltpu.PrefetchScalarGridSpec(
            num_scalar_prefetch=0,
            grid=(N_pad // batch_tile,),
            in_specs=in_specs,
            out_specs=out_spec,
        ),
        compiler_params=pltpu.CompilerParams(
            dimension_semantics=("parallel",),
            vmem_limit_bytes=vmem_limit),
        cost_estimate=cost,
    )(x_p, *weights)

    return out_padded[:N, :O]


# -----------------------------------------------------------------------------
# Params + reference
# -----------------------------------------------------------------------------
def init_params(key, hidden_dim, out_dim, *, weight_dtype=jnp.bfloat16):
    """Synthetic parameters matching nn.Linear / nn.LayerNorm shapes.
    Linear weights stored as [in, out] (transpose of PyTorch's [out, in]),
    in bf16 for the native MXU path; biases / LN params stay f32."""
    ks = jax.random.split(key, 6)

    def linear(kw, kb, fan_in, fan_out):
        bound = 1.0 / (fan_in ** 0.5)
        w = jax.random.uniform(kw, (fan_in, fan_out), jnp.float32, -bound, bound)
        b = jax.random.uniform(kb, (1, fan_out), jnp.float32, -bound, bound)
        return w.astype(weight_dtype), b

    w1, b1 = linear(ks[0], ks[1], IN_DIM, hidden_dim)
    w2, b2 = linear(ks[2], ks[3], hidden_dim, hidden_dim)
    w3, b3 = linear(ks[4], ks[5], hidden_dim, out_dim)
    f32 = jnp.float32
    return {
        "w1": w1, "b1": b1,
        "g1": jnp.ones((1, hidden_dim), f32), "be1": jnp.zeros((1, hidden_dim), f32),
        "w2": w2, "b2": b2,
        "g2": jnp.ones((1, hidden_dim), f32), "be2": jnp.zeros((1, hidden_dim), f32),
        "w3": w3, "b3": b3,
    }


def reference_forward(x, p):
    """Pure-JAX reference (eval-mode dropout), same bf16-weight / f32-accumulate math."""
    cdt = p["w1"].dtype

    def ln(h, g, b):
        mu = jnp.mean(h, axis=-1, keepdims=True)
        var = jnp.mean((h - mu) ** 2, axis=-1, keepdims=True)
        return (h - mu) * jax.lax.rsqrt(var + LN_EPS) * g + b

    def dense(a, w, b):
        return jnp.dot(a.astype(cdt), w, preferred_element_type=jnp.float32) + b

    h = jnp.maximum(ln(dense(x, p["w1"], p["b1"]), p["g1"], p["be1"]), 0.0)
    h = jnp.maximum(ln(dense(h, p["w2"], p["b2"]), p["g2"], p["be2"]), 0.0)
    return dense(h, p["w3"], p["b3"])


if __name__ == "__main__":
    key = jax.random.PRNGKey(0)
    k_x, k_p = jax.random.split(key)

    batch, hidden_dim, out_dim = 16, 32, 16
    x = jax.random.normal(k_x, (batch, IN_DIM), jnp.float32)
    params = init_params(k_p, hidden_dim, out_dim)

    out = jax.block_until_ready(layernormnet_forward(x, params))
    ref = reference_forward(x, params)

    assert out.shape == (batch, out_dim)
    assert jnp.allclose(out, ref, atol=2e-2, rtol=2e-2), "mismatch vs JAX reference"

    print("KERNEL_OK")
</pallas_src>

<mosaic_0001>
module attributes {stable_mosaic.version = 11 : i64} {
  func.func @layernormnet_kernel(%arg0: i32, %arg1: memref<64x1280xf32, #tpu.memory_space<vmem>>, %arg2: memref<1280x128xbf16, #tpu.memory_space<vmem>>, %arg3: memref<1x128xf32, #tpu.memory_space<vmem>>, %arg4: memref<1x128xf32, #tpu.memory_space<vmem>>, %arg5: memref<1x128xf32, #tpu.memory_space<vmem>>, %arg6: memref<128x128xbf16, #tpu.memory_space<vmem>>, %arg7: memref<1x128xf32, #tpu.memory_space<vmem>>, %arg8: memref<1x128xf32, #tpu.memory_space<vmem>>, %arg9: memref<1x128xf32, #tpu.memory_space<vmem>>, %arg10: memref<128x128xbf16, #tpu.memory_space<vmem>>, %arg11: memref<1x128xf32, #tpu.memory_space<vmem>>, %arg12: memref<64x128xf32, #tpu.memory_space<vmem>>) attributes {dimension_semantics = [#tpu.dimension_semantics<parallel>], iteration_bounds = array<i64: 1>, scalar_prefetch = 0 : i64, scratch_operands = 0 : i64, tpu.core_type = #tpu.core_type<tc>, window_params = [{transform_indices = @transform_0, window_bounds = array<i64: 64, 1280>}, {pipeline_mode = #tpu.pipeline_mode<synchronous>, transform_indices = @transform_1, window_bounds = array<i64: 1280, 128>}, {pipeline_mode = #tpu.pipeline_mode<synchronous>, transform_indices = @transform_2, window_bounds = array<i64: 1, 128>}, {pipeline_mode = #tpu.pipeline_mode<synchronous>, transform_indices = @transform_3, window_bounds = array<i64: 1, 128>}, {pipeline_mode = #tpu.pipeline_mode<synchronous>, transform_indices = @transform_4, window_bounds = array<i64: 1, 128>}, {pipeline_mode = #tpu.pipeline_mode<synchronous>, transform_indices = @transform_5, window_bounds = array<i64: 128, 128>}, {pipeline_mode = #tpu.pipeline_mode<synchronous>, transform_indices = @transform_6, window_bounds = array<i64: 1, 128>}, {pipeline_mode = #tpu.pipeline_mode<synchronous>, transform_indices = @transform_7, window_bounds = array<i64: 1, 128>}, {pipeline_mode = #tpu.pipeline_mode<synchronous>, transform_indices = @transform_8, window_bounds = array<i64: 1, 128>}, {pipeline_mode = #tpu.pipeline_mode<synchronous>, transform_indices = @transform_9, window_bounds = array<i64: 128, 128>}, {pipeline_mode = #tpu.pipeline_mode<synchronous>, transform_indices = @transform_10, window_bounds = array<i64: 1, 128>}, {transform_indices = @transform_11, window_bounds = array<i64: 64, 128>}]} {
    %c0 = arith.constant 0 : index
    %c0_0 = arith.constant 0 : index
    %0 = vector.load %arg1[%c0, %c0_0] : memref<64x1280xf32, #tpu.memory_space<vmem>>, vector<64x1280xf32>
    %1 = arith.truncf %0 : vector<64x1280xf32> to vector<64x1280xbf16>
    %c0_1 = arith.constant 0 : index
    %c0_2 = arith.constant 0 : index
    %2 = vector.load %arg2[%c0_1, %c0_2] : memref<1280x128xbf16, #tpu.memory_space<vmem>>, vector<1280x128xbf16>
    %cst = arith.constant dense<0.000000e+00> : vector<64x128xf32>
    %3 = tpu.matmul %1, %2, %cst {dimension_numbers = #tpu.dot_dimension_numbers<[1], [0], [0], [1], [0, 0, 1, 1], [], []>} : vector<64x1280xbf16>, vector<1280x128xbf16>, vector<64x128xf32> -> vector<64x128xf32>
    %c0_3 = arith.constant 0 : index
    %c0_4 = arith.constant 0 : index
    %4 = vector.load %arg3[%c0_3, %c0_4] : memref<1x128xf32, #tpu.memory_space<vmem>>, vector<1x128xf32>
    %5 = vector.broadcast %4 : vector<1x128xf32> to vector<64x128xf32>
    %6 = arith.addf %3, %5 : vector<64x128xf32>
    %c0_5 = arith.constant 0 : index
    %c0_6 = arith.constant 0 : index
    %7 = vector.load %arg4[%c0_5, %c0_6] : memref<1x128xf32, #tpu.memory_space<vmem>>, vector<1x128xf32>
    %c0_7 = arith.constant 0 : index
    %c0_8 = arith.constant 0 : index
    %8 = vector.load %arg5[%c0_7, %c0_8] : memref<1x128xf32, #tpu.memory_space<vmem>>, vector<1x128xf32>
    %cst_9 = arith.constant dense<0.000000e+00> : vector<64xf32>
    %9 = vector.multi_reduction <add>, %6, %cst_9 [1] : vector<64x128xf32> to vector<64xf32>
    %10 = vector.shape_cast %9 : vector<64xf32> to vector<64x1xf32>
    %cst_10 = arith.constant 3.125000e-02 : f32
    %11 = vector.broadcast %cst_10 : f32 to vector<64x1xf32>
    %12 = arith.mulf %10, %11 : vector<64x1xf32>
    %13 = arith.mulf %6, %6 : vector<64x128xf32>
    %cst_11 = arith.constant dense<0.000000e+00> : vector<64xf32>
    %14 = vector.multi_reduction <add>, %13, %cst_11 [1] : vector<64x128xf32> to vector<64xf32>
    %15 = vector.shape_cast %14 : vector<64xf32> to vector<64x1xf32>
    %cst_12 = arith.constant 3.125000e-02 : f32
    %16 = vector.broadcast %cst_12 : f32 to vector<64x1xf32>
    %17 = arith.mulf %15, %16 : vector<64x1xf32>
    %18 = arith.mulf %12, %12 : vector<64x1xf32>
    %19 = arith.subf %17, %18 : vector<64x1xf32>
    %cst_13 = arith.constant 0.000000e+00 : f32
    %20 = vector.broadcast %cst_13 : f32 to vector<64x1xf32>
    %21 = arith.maximumf %19, %20 : vector<64x1xf32>
    %22 = vector.broadcast %12 : vector<64x1xf32> to vector<64x128xf32>
    %23 = arith.subf %6, %22 : vector<64x128xf32>
    %cst_14 = arith.constant 9.99999974E-6 : f32
    %24 = vector.broadcast %cst_14 : f32 to vector<64x1xf32>
    %25 = arith.addf %21, %24 : vector<64x1xf32>
    %26 = math.rsqrt %25 : vector<64x1xf32>
    %27 = vector.broadcast %26 : vector<64x1xf32> to vector<64x128xf32>
    %28 = arith.mulf %23, %27 : vector<64x128xf32>
    %29 = vector.broadcast %7 : vector<1x128xf32> to vector<64x128xf32>
    %30 = arith.mulf %28, %29 : vector<64x128xf32>
    %31 = vector.broadcast %8 : vector<1x128xf32> to vector<64x128xf32>
    %32 = arith.addf %30, %31 : vector<64x128xf32>
    %cst_15 = arith.constant 0.000000e+00 : f32
    %33 = vector.broadcast %cst_15 : f32 to vector<64x128xf32>
    %34 = arith.maximumf %32, %33 : vector<64x128xf32>
    %35 = arith.truncf %34 : vector<64x128xf32> to vector<64x128xbf16>
    %c0_16 = arith.constant 0 : index
    %c0_17 = arith.constant 0 : index
    %36 = vector.load %arg6[%c0_16, %c0_17] : memref<128x128xbf16, #tpu.memory_space<vmem>>, vector<128x128xbf16>
    %cst_18 = arith.constant dense<0.000000e+00> : vector<64x128xf32>
    %37 = tpu.matmul %35, %36, %cst_18 {dimension_numbers = #tpu.dot_dimension_numbers<[1], [0], [0], [1], [0, 0, 1, 1], [], []>} : vector<64x128xbf16>, vector<128x128xbf16>, vector<64x128xf32> -> vector<64x128xf32>
    %c0_19 = arith.constant 0 : index
    %c0_20 = arith.constant 0 : index
    %38 = vector.load %arg7[%c0_19, %c0_20] : memref<1x128xf32, #tpu.memory_space<vmem>>, vector<1x128xf32>
    %39 = vector.broadcast %38 : vector<1x128xf32> to vector<64x128xf32>
    %40 = arith.addf %37, %39 : vector<64x128xf32>
    %c0_21 = arith.constant 0 : index
    %c0_22 = arith.constant 0 : index
    %41 = vector.load %arg8[%c0_21, %c0_22] : memref<1x128xf32, #tpu.memory_space<vmem>>, vector<1x128xf32>
    %c0_23 = arith.constant 0 : index
    %c0_24 = arith.constant 0 : index
    %42 = vector.load %arg9[%c0_23, %c0_24] : memref<1x128xf32, #tpu.memory_space<vmem>>, vector<1x128xf32>
    %cst_25 = arith.constant dense<0.000000e+00> : vector<64xf32>
    %43 = vector.multi_reduction <add>, %40, %cst_25 [1] : vector<64x128xf32> to vector<64xf32>
    %44 = vector.shape_cast %43 : vector<64xf32> to vector<64x1xf32>
    %cst_26 = arith.constant 3.125000e-02 : f32
    %45 = vector.broadcast %cst_26 : f32 to vector<64x1xf32>
    %46 = arith.mulf %44, %45 : vector<64x1xf32>
    %47 = arith.mulf %40, %40 : vector<64x128xf32>
    %cst_27 = arith.constant dense<0.000000e+00> : vector<64xf32>
    %48 = vector.multi_reduction <add>, %47, %cst_27 [1] : vector<64x128xf32> to vector<64xf32>
    %49 = vector.shape_cast %48 : vector<64xf32> to vector<64x1xf32>
    %cst_28 = arith.constant 3.125000e-02 : f32
    %50 = vector.broadcast %cst_28 : f32 to vector<64x1xf32>
    %51 = arith.mulf %49, %50 : vector<64x1xf32>
    %52 = arith.mulf %46, %46 : vector<64x1xf32>
    %53 = arith.subf %51, %52 : vector<64x1xf32>
    %cst_29 = arith.constant 0.000000e+00 : f32
    %54 = vector.broadcast %cst_29 : f32 to vector<64x1xf32>
    %55 = arith.maximumf %53, %54 : vector<64x1xf32>
    %56 = vector.broadcast %46 : vector<64x1xf32> to vector<64x128xf32>
    %57 = arith.subf %40, %56 : vector<64x128xf32>
    %cst_30 = arith.constant 9.99999974E-6 : f32
    %58 = vector.broadcast %cst_30 : f32 to vector<64x1xf32>
    %59 = arith.addf %55, %58 : vector<64x1xf32>
    %60 = math.rsqrt %59 : vector<64x1xf32>
    %61 = vector.broadcast %60 : vector<64x1xf32> to vector<64x128xf32>
    %62 = arith.mulf %57, %61 : vector<64x128xf32>
    %63 = vector.broadcast %41 : vector<1x128xf32> to vector<64x128xf32>
    %64 = arith.mulf %62, %63 : vector<64x128xf32>
    %65 = vector.broadcast %42 : vector<1x128xf32> to vector<64x128xf32>
    %66 = arith.addf %64, %65 : vector<64x128xf32>
    %cst_31 = arith.constant 0.000000e+00 : f32
    %67 = vector.broadcast %cst_31 : f32 to vector<64x128xf32>
    %68 = arith.maximumf %66, %67 : vector<64x128xf32>
    %69 = arith.truncf %68 : vector<64x128xf32> to vector<64x128xbf16>
    %c0_32 = arith.constant 0 : index
    %c0_33 = arith.constant 0 : index
    %70 = vector.load %arg10[%c0_32, %c0_33] : memref<128x128xbf16, #tpu.memory_space<vmem>>, vector<128x128xbf16>
    %cst_34 = arith.constant dense<0.000000e+00> : vector<64x128xf32>
    %71 = tpu.matmul %69, %70, %cst_34 {dimension_numbers = #tpu.dot_dimension_numbers<[1], [0], [0], [1], [0, 0, 1, 1], [], []>} : vector<64x128xbf16>, vector<128x128xbf16>, vector<64x128xf32> -> vector<64x128xf32>
    %c0_35 = arith.constant 0 : index
    %c0_36 = arith.constant 0 : index
    %72 = vector.load %arg11[%c0_35, %c0_36] : memref<1x128xf32, #tpu.memory_space<vmem>>, vector<1x128xf32>
    %73 = vector.broadcast %72 : vector<1x128xf32> to vector<64x128xf32>
    %74 = arith.addf %71, %73 : vector<64x128xf32>
    %c0_37 = arith.constant 0 : index
    %c0_38 = arith.constant 0 : index
    %75 = vector.load %arg12[%c0_37, %c0_38] : memref<64x128xf32, #tpu.memory_space<vmem>>, vector<64x128xf32>
    tpu.vector_store %arg12[%c0_37, %c0_38], %74 {strides = array<i32>} : memref<64x128xf32, #tpu.memory_space<vmem>>, vector<64x128xf32>,
    return
  }
  func.func @transform_0(%arg0: i32) -> (i32, i32) {
    %c0_i32 = arith.constant 0 : i32
    %c0_i32_0 = arith.constant 0 : i32
    return %arg0, %c0_i32 : i32, i32
  }
  func.func @transform_1(%arg0: i32) -> (i32, i32) {
    %c0_i32 = arith.constant 0 : i32
    %c0_i32_0 = arith.constant 0 : i32
    %c0_i32_1 = arith.constant 0 : i32
    return %c0_i32, %c0_i32_0 : i32, i32
  }
  func.func @transform_2(%arg0: i32) -> (i32, i32) {
    %c0_i32 = arith.constant 0 : i32
    %c0_i32_0 = arith.constant 0 : i32
    %c0_i32_1 = arith.constant 0 : i32
    return %c0_i32, %c0_i32_0 : i32, i32
  }
  func.func @transform_3(%arg0: i32) -> (i32, i32) {
    %c0_i32 = arith.constant 0 : i32
    %c0_i32_0 = arith.constant 0 : i32
    %c0_i32_1 = arith.constant 0 : i32
    return %c0_i32, %c0_i32_0 : i32, i32
  }
  func.func @transform_4(%arg0: i32) -> (i32, i32) {
    %c0_i32 = arith.constant 0 : i32
    %c0_i32_0 = arith.constant 0 : i32
    %c0_i32_1 = arith.constant 0 : i32
    return %c0_i32, %c0_i32_0 : i32, i32
  }
  func.func @transform_5(%arg0: i32) -> (i32, i32) {
    %c0_i32 = arith.constant 0 : i32
    %c0_i32_0 = arith.constant 0 : i32
    %c0_i32_1 = arith.constant 0 : i32
    return %c0_i32, %c0_i32_0 : i32, i32
  }
  func.func @transform_6(%arg0: i32) -> (i32, i32) {
    %c0_i32 = arith.constant 0 : i32
    %c0_i32_0 = arith.constant 0 : i32
    %c0_i32_1 = arith.constant 0 : i32
    return %c0_i32, %c0_i32_0 : i32, i32
  }
  func.func @transform_7(%arg0: i32) -> (i32, i32) {
    %c0_i32 = arith.constant 0 : i32
    %c0_i32_0 = arith.constant 0 : i32
    %c0_i32_1 = arith.constant 0 : i32
    return %c0_i32, %c0_i32_0 : i32, i32
  }
  func.func @transform_8(%arg0: i32) -> (i32, i32) {
    %c0_i32 = arith.constant 0 : i32
    %c0_i32_0 = arith.constant 0 : i32
    %c0_i32_1 = arith.constant 0 : i32
    return %c0_i32, %c0_i32_0 : i32, i32
  }
  func.func @transform_9(%arg0: i32) -> (i32, i32) {
    %c0_i32 = arith.constant 0 : i32
    %c0_i32_0 = arith.constant 0 : i32
    %c0_i32_1 = arith.constant 0 : i32
    return %c0_i32, %c0_i32_0 : i32, i32
  }
  func.func @transform_10(%arg0: i32) -> (i32, i32) {
    %c0_i32 = arith.constant 0 : i32
    %c0_i32_0 = arith.constant 0 : i32
    %c0_i32_1 = arith.constant 0 : i32
    return %c0_i32, %c0_i32_0 : i32, i32
  }
  func.func @transform_11(%arg0: i32) -> (i32, i32) {
    %c0_i32 = arith.constant 0 : i32
    %c0_i32_0 = arith.constant 0 : i32
    return %arg0, %c0_i32 : i32, i32
  }
}

</mosaic_0001>

<llo_original>
// kernel: tpu_custom_call.1
$region0: #{tpu_custom_call.1}
  #allocation0 [shape = 'u32[]', space=smem, size = 0x4, offset = 0x4, fixed_abs, tag = 'smem constant byte address 0x4 - core index']
  #allocation1 [shape = 'u32[144,128]{1,0:T(1,128)}', space=vmem, size = 0x12000, scoped, tag = 'internal scratch']
  %s0 = inlined_call_operand.hbm [shape: f32[64,1280], index: 0, kind: input, shape index: {}]
  %s1 = inlined_call_operand.hbm [shape: bf16[1280,128], index: 1, kind: input, shape index: {}]
  %s2 = inlined_call_operand.vmem [shape: f32[1,128], index: 2, kind: input, shape index: {}]
  %s3 = inlined_call_operand.vmem [shape: f32[1,128], index: 3, kind: input, shape index: {}]
  %s4 = inlined_call_operand.vmem [shape: f32[1,128], index: 4, kind: input, shape index: {}]
  %s5 = inlined_call_operand.hbm [shape: bf16[128,128], index: 5, kind: input, shape index: {}]
  %s6 = inlined_call_operand.vmem [shape: f32[1,128], index: 6, kind: input, shape index: {}]
  %s7 = inlined_call_operand.vmem [shape: f32[1,128], index: 7, kind: input, shape index: {}]
  %s8 = inlined_call_operand.vmem [shape: f32[1,128], index: 8, kind: input, shape index: {}]
  %s9 = inlined_call_operand.hbm [shape: bf16[128,128], index: 9, kind: input, shape index: {}]
  %s10 = inlined_call_operand.vmem [shape: f32[1,128], index: 10, kind: input, shape index: {}]
  %s11 = inlined_call_operand.hbm [shape: f32[64,128], index: 11, kind: output, shape index: {}]
  %s12 = sld [smem:[#allocation0]]
  $region70: #{tpu_custom_call.1} parent=0
    _
  %s14 = ssub.s32 1, %s12
  %s15 = scalar_select 0, %s14, %s12
  $region1: #{tpu_custom_call.1} parent=0
    #allocation2 [shape = 'u8[327680]{0}', space=vmem, size = 0x50000, scoped, tag = 'input window, operand 0, single buffered']
    #allocation3 [shape = 's32[1]{0}', space=sflag, size = 0x4, scoped, tag = 'scoped memory for tpu_custom_call.1']
    #allocation4 [shape = 's32[1]{0}', space=sflag, size = 0x4, scoped, tag = 'scoped memory for tpu_custom_call.1']
    #allocation5 [shape = 'u8[327680]{0}', space=vmem, size = 0x50000, scoped, tag = 'input window, operand 1, single buffered']
    #allocation6 [shape = 's32[1]{0}', space=sflag, size = 0x4, scoped, tag = 'scoped memory for tpu_custom_call.1']
    #allocation7 [shape = 'u8[32768]{0}', space=vmem, size = 0x8000, scoped, tag = 'input window, operand 5, single buffered']
    #allocation8 [shape = 'u8[32768]{0}', space=vmem, size = 0x8000, scoped, tag = 'input window, operand 9, single buffered']
    #allocation9 [shape = 's32[1]{0}', space=sflag, size = 0x4, scoped, tag = 'scoped memory for tpu_custom_call.1']
    #allocation10 [shape = 'u8[32768]{0}', space=vmem, size = 0x8000, scoped, tag = 'output window, operand 0, single buffered']
    %16 = vsyncpa [#allocation3], 0
    %17 = vsyncpa [#allocation6], 0
    %18 = vsyncpa [#allocation9], 0
    %19 = vsyncpa [#allocation4], 0
    // Predicated region
    $region2: #{tpu_custom_call.1} parent=1 // pred_check
      _
    $region3: #{tpu_custom_call.1} parent=1 // pred_check_branch
      %21 = sbr.rel (0) target = $region5
    $region4: #{tpu_custom_call.1} parent=1 // pred_region
      %s23 = ssub.s32 10240, 10240
      %24 = vsyncadd [#allocation3], %s23
      %s25 = sshll.u32 [#allocation2], 4
      %s26 = int_to_ptr.vmem [resolvable:$true] %s25
      %31 = dma.hbm_to_vmem [thread:$0]  %s0, 10240, %s26, [#allocation3], 1280, 1280, 80
    $region5: #{tpu_custom_call.1} parent=1 // pred_fallthru
      _
    // Predicated region
    $region6: #{tpu_custom_call.1} parent=1 // pred_check
      _
    $region7: #{tpu_custom_call.1} parent=1 // pred_check_branch
      %33 = sbr.rel (0) target = $region9
    $region8: #{tpu_custom_call.1} parent=1 // pred_region
      %s35 = ssub.s32 10240, 10240
      %36 = vsyncadd [#allocation6], %s35
      %s37 = sshll.u32 [#allocation5], 4
      %s38 = int_to_ptr.vmem [resolvable:$true] %s37
      %43 = dma.hbm_to_vmem [thread:$0]  %s1, 10240, %s38, [#allocation6], 64, 64, 4
    $region9: #{tpu_custom_call.1} parent=1 // pred_fallthru
      _
    // Predicated region
    $region10: #{tpu_custom_call.1} parent=1 // pred_check
      _
    $region11: #{tpu_custom_call.1} parent=1 // pred_check_branch
      %45 = sbr.rel (0) target = $region13
    $region12: #{tpu_custom_call.1} parent=1 // pred_region
      _
    $region13: #{tpu_custom_call.1} parent=1 // pred_fallthru
      _
    // Predicated region
    $region14: #{tpu_custom_call.1} parent=1 // pred_check
      _
    $region15: #{tpu_custom_call.1} parent=1 // pred_check_branch
      %47 = sbr.rel (0) target = $region17
    $region16: #{tpu_custom_call.1} parent=1 // pred_region
      _
    $region17: #{tpu_custom_call.1} parent=1 // pred_fallthru
      _
    // Predicated region
    $region18: #{tpu_custom_call.1} parent=1 // pred_check
      _
    $region19: #{tpu_custom_call.1} parent=1 // pred_check_branch
      %49 = sbr.rel (0) target = $region21
    $region20: #{tpu_custom_call.1} parent=1 // pred_region
      _
    $region21: #{tpu_custom_call.1} parent=1 // pred_fallthru
      _
    // Predicated region
    $region22: #{tpu_custom_call.1} parent=1 // pred_check
      _
    $region23: #{tpu_custom_call.1} parent=1 // pred_check_branch
      %51 = sbr.rel (0) target = $region25
    $region24: #{tpu_custom_call.1} parent=1 // pred_region
      %s53 = ssub.s32 1024, 1024
      %54 = vsyncadd [#allocation6], %s53
      %s55 = sshll.u32 [#allocation7], 4
      %s56 = int_to_ptr.vmem [resolvable:$true] %s55
      %61 = dma.hbm_to_vmem [thread:$0]  %s5, 1024, %s56, [#allocation6], 64, 64, 4
    $region25: #{tpu_custom_call.1} parent=1 // pred_fallthru
      _
    // Predicated region
    $region26: #{tpu_custom_call.1} parent=1 // pred_check
      _
    $region27: #{tpu_custom_call.1} parent=1 // pred_check_branch
      %63 = sbr.rel (0) target = $region29
    $region28: #{tpu_custom_call.1} parent=1 // pred_region
      _
    $region29: #{tpu_custom_call.1} parent=1 // pred_fallthru
      _
    // Predicated region
    $region30: #{tpu_custom_call.1} parent=1 // pred_check
      _
    $region31: #{tpu_custom_call.1} parent=1 // pred_check_branch
      %65 = sbr.rel (0) target = $region33
    $region32: #{tpu_custom_call.1} parent=1 // pred_region
      _
    $region33: #{tpu_custom_call.1} parent=1 // pred_fallthru
      _
    // Predicated region
    $region34: #{tpu_custom_call.1} parent=1 // pred_check
      _
    $region35: #{tpu_custom_call.1} parent=1 // pred_check_branch
      %67 = sbr.rel (0) target = $region37
    $region36: #{tpu_custom_call.1} parent=1 // pred_region
      _
    $region37: #{tpu_custom_call.1} parent=1 // pred_fallthru
      _
    // Predicated region
    $region38: #{tpu_custom_call.1} parent=1 // pred_check
      _
    $region39: #{tpu_custom_call.1} parent=1 // pred_check_branch
      %69 = sbr.rel (0) target = $region41
    $region40: #{tpu_custom_call.1} parent=1 // pred_region
      %s71 = ssub.s32 1024, 1024
      %72 = vsyncadd [#allocation9], %s71
      %s73 = sshll.u32 [#allocation8], 4
      %s74 = int_to_ptr.vmem [resolvable:$true] %s73
      %79 = dma.hbm_to_vmem [thread:$0]  %s9, 1024, %s74, [#allocation9], 64, 64, 4
    $region41: #{tpu_custom_call.1} parent=1 // pred_fallthru
      _
    // Predicated region
    $region42: #{tpu_custom_call.1} parent=1 // pred_check
      _
    $region43: #{tpu_custom_call.1} parent=1 // pred_check_branch
      %81 = sbr.rel (0) target = $region45
    $region44: #{tpu_custom_call.1} parent=1 // pred_region
      _
    $region45: #{tpu_custom_call.1} parent=1 // pred_fallthru
      _
    // Predicated region
    $region46: #{tpu_custom_call.1} parent=1 // pred_check
      _
    $region47: #{tpu_custom_call.1} parent=1 // pred_check_branch
      %83 = sbr.rel (0) target = $region49
    $region48: #{tpu_custom_call.1} parent=1 // pred_region
      %84 = dma.done [#allocation3], 10240
    $region49: #{tpu_custom_call.1} parent=1 // pred_fallthru
      _
    // Predicated region
    $region50: #{tpu_custom_call.1} parent=1 // pred_check
      _
    $region51: #{tpu_custom_call.1} parent=1 // pred_check_branch
      %86 = sbr.rel (0) target = $region53
    $region52: #{tpu_custom_call.1} parent=1 // pred_region
      %87 = dma.done [#allocation6], 10240
    $region53: #{tpu_custom_call.1} parent=1 // pred_fallthru
      _
    // Predicated region
    $region54: #{tpu_custom_call.1} parent=1 // pred_check
      _
    $region55: #{tpu_custom_call.1} parent=1 // pred_check_branch
      %89 = sbr.rel (0) target = $region57
    $region56: #{tpu_custom_call.1} parent=1 // pred_region
      %90 = dma.done [#allocation6], 1024
    $region57: #{tpu_custom_call.1} parent=1 // pred_fallthru
      _
    // Predicated region
    $region58: #{tpu_custom_call.1} parent=1 // pred_check
      _
    $region59: #{tpu_custom_call.1} parent=1 // pred_check_branch
      %92 = sbr.rel (0) target = $region61
    $region60: #{tpu_custom_call.1} parent=1 // pred_region
      %93 = dma.done [#allocation9], 1024
    $region61: #{tpu_custom_call.1} parent=1 // pred_fallthru
      _
    %v95 = vld [vmem:[#allocation2] sm:$0xff]
    %v96 = vld [vmem:[#allocation2 + $0x8] sm:$0xff]
    %v97 = vld [vmem:[#allocation2 + $0x10] sm:$0xff]
    %v98 = vld [vmem:[#allocation2 + $0x18] sm:$0xff]
    %v99 = vld [vmem:[#allocation2 + $0x20] sm:$0xff]
    %v100 = vld [vmem:[#allocation2 + $0x28] sm:$0xff]
    %v101 = vld [vmem:[#allocation2 + $0x30] sm:$0xff]
    %v102 = vld [vmem:[#allocation2 + $0x38] sm:$0xff]
    %v103 = vld [vmem:[#allocation2 + $0x40] sm:$0xff]
    %v104 = vld [vmem:[#allocation2 + $0x48] sm:$0xff]
    %v105 = vld [vmem:[#allocation2 + $0x50] sm:$0xff]
    %v106 = vld [vmem:[#allocation2 + $0x58] sm:$0xff]
    %v107 = vld [vmem:[#allocation2 + $0x60] sm:$0xff]
    %v108 = vld [vmem:[#allocation2 + $0x68] sm:$0xff]
    %v109 = vld [vmem:[#allocation2 + $0x70] sm:$0xff]
    %v110 = vld [vmem:[#allocation2 + $0x78] sm:$0xff]
    %v111 = vld [vmem:[#allocation2 + $0x80] sm:$0xff]
    %v112 = vld [vmem:[#allocation2 + $0x88] sm:$0xff]
    %v113 = vld [vmem:[#allocation2 + $0x90] sm:$0xff]
    %v114 = vld [vmem:[#allocation2 + $0x98] sm:$0xff]
    %v115 = vld [vmem:[#allocation2 + $0xa0] sm:$0xff]
    %v116 = vld [vmem:[#allocation2 + $0xa8] sm:$0xff]
    %v117 = vld [vmem:[#allocation2 + $0xb0] sm:$0xff]
    %v118 = vld [vmem:[#allocation2 + $0xb8] sm:$0xff]
    %v119 = vld [vmem:[#allocation2 + $0xc0] sm:$0xff]
    %v120 = vld [vmem:[#allocation2 + $0xc8] sm:$0xff]
    %v121 = vld [vmem:[#allocation2 + $0xd0] sm:$0xff]
    %v122 = vld [vmem:[#allocation2 + $0xd8] sm:$0xff]
    %v123 = vld [vmem:[#allocation2 + $0xe0] sm:$0xff]
    %v124 = vld [vmem:[#allocation2 + $0xe8] sm:$0xff]
    %v125 = vld [vmem:[#allocation2 + $0xf0] sm:$0xff]
    %v126 = vld [vmem:[#allocation2 + $0xf8] sm:$0xff]
    %v127 = vld [vmem:[#allocation2 + $0x100] sm:$0xff]
    %v128 = vld [vmem:[#allocation2 + $0x108] sm:$0xff]
    %v129 = vld [vmem:[#allocation2 + $0x110] sm:$0xff]
    %v130 = vld [vmem:[#allocation2 + $0x118] sm:$0xff]
    %v131 = vld [vmem:[#allocation2 + $0x120] sm:$0xff]
    %v132 = vld [vmem:[#allocation2 + $0x128] sm:$0xff]
    %v133 = vld [vmem:[#allocation2 + $0x130] sm:$0xff]
    %v134 = vld [vmem:[#allocation2 + $0x138] sm:$0xff]
    %v135 = vld [vmem:[#allocation2 + $0x140] sm:$0xff]
    %v136 = vld [vmem:[#allocation2 + $0x148] sm:$0xff]
    %v137 = vld [vmem:[#allocation2 + $0x150] sm:$0xff]
    %v138 = vld [vmem:[#allocation2 + $0x158] sm:$0xff]
    %v139 = vld [vmem:[#allocation2 + $0x160] sm:$0xff]
    %v140 = vld [vmem:[#allocation2 + $0x168] sm:$0xff]
    %v141 = vld [vmem:[#allocation2 + $0x170] sm:$0xff]
    %v142 = vld [vmem:[#allocation2 + $0x178] sm:$0xff]
    %v143 = vld [vmem:[#allocation2 + $0x180] sm:$0xff]
    %v144 = vld [vmem:[#allocation2 + $0x188] sm:$0xff]
    %v145 = vld [vmem:[#allocation2 + $0x190] sm:$0xff]
    %v146 = vld [vmem:[#allocation2 + $0x198] sm:$0xff]
    %v147 = vld [vmem:[#allocation2 + $0x1a0] sm:$0xff]
    %v148 = vld [vmem:[#allocation2 + $0x1a8] sm:$0xff]
    %v149 = vld [vmem:[#allocation2 + $0x1b0] sm:$0xff]
    %v150 = vld [vmem:[#allocation2 + $0x1b8] sm:$0xff]
    %v151 = vld [vmem:[#allocation2 + $0x1c0] sm:$0xff]
    %v152 = vld [vmem:[#allocation2 + $0x1c8] sm:$0xff]
    %v153 = vld [vmem:[#allocation2 + $0x1d0] sm:$0xff]
    %v154 = vld [vmem:[#allocation2 + $0x1d8] sm:$0xff]
    %v155 = vld [vmem:[#allocation2 + $0x1e0] sm:$0xff]
    %v156 = vld [vmem:[#allocation2 + $0x1e8] sm:$0xff]
    %v157 = vld [vmem:[#allocation2 + $0x1f0] sm:$0xff]
    %v158 = vld [vmem:[#allocation2 + $0x1f8] sm:$0xff]
    %v159 = vld [vmem:[#allocation2 + $0x200] sm:$0xff]
    %v160 = vld [vmem:[#allocation2 + $0x208] sm:$0xff]
    %v161 = vld [vmem:[#allocation2 + $0x210] sm:$0xff]
    %v162 = vld [vmem:[#allocation2 + $0x218] sm:$0xff]
    %v163 = vld [vmem:[#allocation2 + $0x220] sm:$0xff]
    %v164 = vld [vmem:[#allocation2 + $0x228] sm:$0xff]
    %v165 = vld [vmem:[#allocation2 + $0x230] sm:$0xff]
    %v166 = vld [vmem:[#allocation2 + $0x238] sm:$0xff]
    %v167 = vld [vmem:[#allocation2 + $0x240] sm:$0xff]
    %v168 = vld [vmem:[#allocation2 + $0x248] sm:$0xff]
    %v169 = vld [vmem:[#allocation2 + $0x250] sm:$0xff]
    %v170 = vld [vmem:[#allocation2 + $0x258] sm:$0xff]
    %v171 = vld [vmem:[#allocation2 + $0x260] sm:$0xff]
    %v172 = vld [vmem:[#allocation2 + $0x268] sm:$0xff]
    %v173 = vld [vmem:[#allocation2 + $0x270] sm:$0xff]
    %v174 = vld [vmem:[#allocation2 + $0x278] sm:$0xff]
    %v175 = vpack.c.bf16 %v105, %v95
    %v176 = vpack.c.bf16 %v106, %v96
    %v177 = vpack.c.bf16 %v107, %v97
    %v178 = vpack.c.bf16 %v108, %v98
    %v179 = vpack.c.bf16 %v109, %v99
    %v180 = vpack.c.bf16 %v110, %v100
    %v181 = vpack.c.bf16 %v111, %v101
    %v182 = vpack.c.bf16 %v112, %v102
    %v183 = vpack.c.bf16 %v113, %v103
    %v184 = vpack.c.bf16 %v114, %v104
    %v185 = vpack.c.bf16 %v125, %v115
    %v186 = vpack.c.bf16 %v126, %v116
    %v187 = vpack.c.bf16 %v127, %v117
    %v188 = vpack.c.bf16 %v128, %v118
    %v189 = vpack.c.bf16 %v129, %v119
    %v190 = vpack.c.bf16 %v130, %v120
    %v191 = vpack.c.bf16 %v131, %v121
    %v192 = vpack.c.bf16 %v132, %v122
    %v193 = vpack.c.bf16 %v133, %v123
    %v194 = vpack.c.bf16 %v134, %v124
    %v195 = vpack.c.bf16 %v145, %v135
    %v196 = vpack.c.bf16 %v146, %v136
    %v197 = vpack.c.bf16 %v147, %v137
    %v198 = vpack.c.bf16 %v148, %v138
    %v199 = vpack.c.bf16 %v149, %v139
    %v200 = vpack.c.bf16 %v150, %v140
    %v201 = vpack.c.bf16 %v151, %v141
    %v202 = vpack.c.bf16 %v152, %v142
    %v203 = vpack.c.bf16 %v153, %v143
    %v204 = vpack.c.bf16 %v154, %v144
    %v205 = vpack.c.bf16 %v165, %v155
    %v206 = vpack.c.bf16 %v166, %v156
    %v207 = vpack.c.bf16 %v167, %v157
    %v208 = vpack.c.bf16 %v168, %v158
    %v209 = vpack.c.bf16 %v169, %v159
    %v210 = vpack.c.bf16 %v170, %v160
    %v211 = vpack.c.bf16 %v171, %v161
    %v212 = vpack.c.bf16 %v172, %v162
    %v213 = vpack.c.bf16 %v173, %v163
    %v214 = vpack.c.bf16 %v174, %v164
    %v215 = vld [vmem:[#allocation5] sm:$0xf]
    %v216 = vld [vmem:[#allocation5 + $0x4] sm:$0xf]
    %v217 = vld [vmem:[#allocation5 + $0x8] sm:$0xf]
    %v218 = vld [vmem:[#allocation5 + $0xc] sm:$0xf]
    %v219 = vld [vmem:[#allocation5 + $0x10] sm:$0xf]
    %v220 = vld [vmem:[#allocation5 + $0x14] sm:$0xf]
    %v221 = vld [vmem:[#allocation5 + $0x18] sm:$0xf]
    %v222 = vld [vmem:[#allocation5 + $0x1c] sm:$0xf]
    %v223 = vld [vmem:[#allocation5 + $0x20] sm:$0xf]
    %v224 = vld [vmem:[#allocation5 + $0x24] sm:$0xf]
    %v225 = vld [vmem:[#allocation5 + $0x28] sm:$0xf]
    %v226 = vld [vmem:[#allocation5 + $0x2c] sm:$0xf]
    %v227 = vld [vmem:[#allocation5 + $0x30] sm:$0xf]
    %v228 = vld [vmem:[#allocation5 + $0x34] sm:$0xf]
    %v229 = vld [vmem:[#allocation5 + $0x38] sm:$0xf]
    %v230 = vld [vmem:[#allocation5 + $0x3c] sm:$0xf]
    %v231 = vld [vmem:[#allocation5 + $0x40] sm:$0xf]
    %v232 = vld [vmem:[#allocation5 + $0x44] sm:$0xf]
    %v233 = vld [vmem:[#allocation5 + $0x48] sm:$0xf]
    %v234 = vld [vmem:[#allocation5 + $0x4c] sm:$0xf]
    %v235 = vld [vmem:[#allocation5 + $0x50] sm:$0xf]
    %v236 = vld [vmem:[#allocation5 + $0x54] sm:$0xf]
    %v237 = vld [vmem:[#allocation5 + $0x58] sm:$0xf]
    %v238 = vld [vmem:[#allocation5 + $0x5c] sm:$0xf]
    %v239 = vld [vmem:[#allocation5 + $0x60] sm:$0xf]
    %v240 = vld [vmem:[#allocation5 + $0x64] sm:$0xf]
    %v241 = vld [vmem:[#allocation5 + $0x68] sm:$0xf]
    %v242 = vld [vmem:[#allocation5 + $0x6c] sm:$0xf]
    %v243 = vld [vmem:[#allocation5 + $0x70] sm:$0xf]
    %v244 = vld [vmem:[#allocation5 + $0x74] sm:$0xf]
    %v245 = vld [vmem:[#allocation5 + $0x78] sm:$0xf]
    %v246 = vld [vmem:[#allocation5 + $0x7c] sm:$0xf]
    %v247 = vld [vmem:[#allocation5 + $0x80] sm:$0xf]
    %v248 = vld [vmem:[#allocation5 + $0x84] sm:$0xf]
    %v249 = vld [vmem:[#allocation5 + $0x88] sm:$0xf]
    %v250 = vld [vmem:[#allocation5 + $0x8c] sm:$0xf]
    %v251 = vld [vmem:[#allocation5 + $0x90] sm:$0xf]
    %v252 = vld [vmem:[#allocation5 + $0x94] sm:$0xf]
    %v253 = vld [vmem:[#allocation5 + $0x98] sm:$0xf]
    %v254 = vld [vmem:[#allocation5 + $0x9c] sm:$0xf]
    %v255 = vld [vmem:[#allocation5 + $0xa0] sm:$0xf]
    %v256 = vld [vmem:[#allocation5 + $0xa4] sm:$0xf]
    %v257 = vld [vmem:[#allocation5 + $0xa8] sm:$0xf]
    %v258 = vld [vmem:[#allocation5 + $0xac] sm:$0xf]
    %v259 = vld [vmem:[#allocation5 + $0xb0] sm:$0xf]
    %v260 = vld [vmem:[#allocation5 + $0xb4] sm:$0xf]
    %v261 = vld [vmem:[#allocation5 + $0xb8] sm:$0xf]
    %v262 = vld [vmem:[#allocation5 + $0xbc] sm:$0xf]
    %v263 = vld [vmem:[#allocation5 + $0xc0] sm:$0xf]
    %v264 = vld [vmem:[#allocation5 + $0xc4] sm:$0xf]
    %v265 = vld [vmem:[#allocation5 + $0xc8] sm:$0xf]
    %v266 = vld [vmem:[#allocation5 + $0xcc] sm:$0xf]
    %v267 = vld [vmem:[#allocation5 + $0xd0] sm:$0xf]
    %v268 = vld [vmem:[#allocation5 + $0xd4] sm:$0xf]
    %v269 = vld [vmem:[#allocation5 + $0xd8] sm:$0xf]
    %v270 = vld [vmem:[#allocation5 + $0xdc] sm:$0xf]
    %v271 = vld [vmem:[#allocation5 + $0xe0] sm:$0xf]
    %v272 = vld [vmem:[#allocation5 + $0xe4] sm:$0xf]
    %v273 = vld [vmem:[#allocation5 + $0xe8] sm:$0xf]
    %v274 = vld [vmem:[#allocation5 + $0xec] sm:$0xf]
    %v275 = vld [vmem:[#allocation5 + $0xf0] sm:$0xf]
    %v276 = vld [vmem:[#allocation5 + $0xf4] sm:$0xf]
    %v277 = vld [vmem:[#allocation5 + $0xf8] sm:$0xf]
    %v278 = vld [vmem:[#allocation5 + $0xfc] sm:$0xf]
    %v279 = vld [vmem:[#allocation5 + $0x100] sm:$0xf]
    %v280 = vld [vmem:[#allocation5 + $0x104] sm:$0xf]
    %v281 = vld [vmem:[#allocation5 + $0x108] sm:$0xf]
    %v282 = vld [vmem:[#allocation5 + $0x10c] sm:$0xf]
    %v283 = vld [vmem:[#allocation5 + $0x110] sm:$0xf]
    %v284 = vld [vmem:[#allocation5 + $0x114] sm:$0xf]
    %v285 = vld [vmem:[#allocation5 + $0x118] sm:$0xf]
    %v286 = vld [vmem:[#allocation5 + $0x11c] sm:$0xf]
    %v287 = vld [vmem:[#allocation5 + $0x120] sm:$0xf]
    %v288 = vld [vmem:[#allocation5 + $0x124] sm:$0xf]
    %v289 = vld [vmem:[#allocation5 + $0x128] sm:$0xf]
    %v290 = vld [vmem:[#allocation5 + $0x12c] sm:$0xf]
    %v291 = vld [vmem:[#allocation5 + $0x130] sm:$0xf]
    %v292 = vld [vmem:[#allocation5 + $0x134] sm:$0xf]
    %v293 = vld [vmem:[#allocation5 + $0x138] sm:$0xf]
    %v294 = vld [vmem:[#allocation5 + $0x13c] sm:$0xf]
    %v295 = vld [vmem:[#allocation5 + $0x140] sm:$0xf]
    %v296 = vld [vmem:[#allocation5 + $0x144] sm:$0xf]
    %v297 = vld [vmem:[#allocation5 + $0x148] sm:$0xf]
    %v298 = vld [vmem:[#allocation5 + $0x14c] sm:$0xf]
    %v299 = vld [vmem:[#allocation5 + $0x150] sm:$0xf]
    %v300 = vld [vmem:[#allocation5 + $0x154] sm:$0xf]
    %v301 = vld [vmem:[#allocation5 + $0x158] sm:$0xf]
    %v302 = vld [vmem:[#allocation5 + $0x15c] sm:$0xf]
    %v303 = vld [vmem:[#allocation5 + $0x160] sm:$0xf]
    %v304 = vld [vmem:[#allocation5 + $0x164] sm:$0xf]
    %v305 = vld [vmem:[#allocation5 + $0x168] sm:$0xf]
    %v306 = vld [vmem:[#allocation5 + $0x16c] sm:$0xf]
    %v307 = vld [vmem:[#allocation5 + $0x170] sm:$0xf]
    %v308 = vld [vmem:[#allocation5 + $0x174] sm:$0xf]
    %v309 = vld [vmem:[#allocation5 + $0x178] sm:$0xf]
    %v310 = vld [vmem:[#allocation5 + $0x17c] sm:$0xf]
    %v311 = vld [vmem:[#allocation5 + $0x180] sm:$0xf]
    %v312 = vld [vmem:[#allocation5 + $0x184] sm:$0xf]
    %v313 = vld [vmem:[#allocation5 + $0x188] sm:$0xf]
    %v314 = vld [vmem:[#allocation5 + $0x18c] sm:$0xf]
    %v315 = vld [vmem:[#allocation5 + $0x190] sm:$0xf]
    %v316 = vld [vmem:[#allocation5 + $0x194] sm:$0xf]
    %v317 = vld [vmem:[#allocation5 + $0x198] sm:$0xf]
    %v318 = vld [vmem:[#allocation5 + $0x19c] sm:$0xf]
    %v319 = vld [vmem:[#allocation5 + $0x1a0] sm:$0xf]
    %v320 = vld [vmem:[#allocation5 + $0x1a4] sm:$0xf]
    %v321 = vld [vmem:[#allocation5 + $0x1a8] sm:$0xf]
    %v322 = vld [vmem:[#allocation5 + $0x1ac] sm:$0xf]
    %v323 = vld [vmem:[#allocation5 + $0x1b0] sm:$0xf]
    %v324 = vld [vmem:[#allocation5 + $0x1b4] sm:$0xf]
    %v325 = vld [vmem:[#allocation5 + $0x1b8] sm:$0xf]
    %v326 = vld [vmem:[#allocation5 + $0x1bc] sm:$0xf]
    %v327 = vld [vmem:[#allocation5 + $0x1c0] sm:$0xf]
    %v328 = vld [vmem:[#allocation5 + $0x1c4] sm:$0xf]
    %v329 = vld [vmem:[#allocation5 + $0x1c8] sm:$0xf]
    %v330 = vld [vmem:[#allocation5 + $0x1cc] sm:$0xf]
    %v331 = vld [vmem:[#allocation5 + $0x1d0] sm:$0xf]
    %v332 = vld [vmem:[#allocation5 + $0x1d4] sm:$0xf]
    %v333 = vld [vmem:[#allocation5 + $0x1d8] sm:$0xf]
    %v334 = vld [vmem:[#allocation5 + $0x1dc] sm:$0xf]
    %v335 = vld [vmem:[#allocation5 + $0x1e0] sm:$0xf]
    %v336 = vld [vmem:[#allocation5 + $0x1e4] sm:$0xf]
    %v337 = vld [vmem:[#allocation5 + $0x1e8] sm:$0xf]
    %v338 = vld [vmem:[#allocation5 + $0x1ec] sm:$0xf]
    %v339 = vld [vmem:[#allocation5 + $0x1f0] sm:$0xf]
    %v340 = vld [vmem:[#allocation5 + $0x1f4] sm:$0xf]
    %v341 = vld [vmem:[#allocation5 + $0x1f8] sm:$0xf]
    %v342 = vld [vmem:[#allocation5 + $0x1fc] sm:$0xf]
    %v343 = vld [vmem:[#allocation5 + $0x200] sm:$0xf]
    %v344 = vld [vmem:[#allocation5 + $0x204] sm:$0xf]
    %v345 = vld [vmem:[#allocation5 + $0x208] sm:$0xf]
    %v346 = vld [vmem:[#allocation5 + $0x20c] sm:$0xf]
    %v347 = vld [vmem:[#allocation5 + $0x210] sm:$0xf]
    %v348 = vld [vmem:[#allocation5 + $0x214] sm:$0xf]
    %v349 = vld [vmem:[#allocation5 + $0x218] sm:$0xf]
    %v350 = vld [vmem:[#allocation5 + $0x21c] sm:$0xf]
    %v351 = vld [vmem:[#allocation5 + $0x220] sm:$0xf]
    %v352 = vld [vmem:[#allocation5 + $0x224] sm:$0xf]
    %v353 = vld [vmem:[#allocation5 + $0x228] sm:$0xf]
    %v354 = vld [vmem:[#allocation5 + $0x22c] sm:$0xf]
    %v355 = vld [vmem:[#allocation5 + $0x230] sm:$0xf]
    %v356 = vld [vmem:[#allocation5 + $0x234] sm:$0xf]
    %v357 = vld [vmem:[#allocation5 + $0x238] sm:$0xf]
    %v358 = vld [vmem:[#allocation5 + $0x23c] sm:$0xf]
    %v359 = vld [vmem:[#allocation5 + $0x240] sm:$0xf]
    %v360 = vld [vmem:[#allocation5 + $0x244] sm:$0xf]
    %v361 = vld [vmem:[#allocation5 + $0x248] sm:$0xf]
    %v362 = vld [vmem:[#allocation5 + $0x24c] sm:$0xf]
    %v363 = vld [vmem:[#allocation5 + $0x250] sm:$0xf]
    %v364 = vld [vmem:[#allocation5 + $0x254] sm:$0xf]
    %v365 = vld [vmem:[#allocation5 + $0x258] sm:$0xf]
    %v366 = vld [vmem:[#allocation5 + $0x25c] sm:$0xf]
    %v367 = vld [vmem:[#allocation5 + $0x260] sm:$0xf]
    %v368 = vld [vmem:[#allocation5 + $0x264] sm:$0xf]
    %v369 = vld [vmem:[#allocation5 + $0x268] sm:$0xf]
    %v370 = vld [vmem:[#allocation5 + $0x26c] sm:$0xf]
    %v371 = vld [vmem:[#allocation5 + $0x270] sm:$0xf]
    %v372 = vld [vmem:[#allocation5 + $0x274] sm:$0xf]
    %v373 = vld [vmem:[#allocation5 + $0x278] sm:$0xf]
    %v374 = vld [vmem:[#allocation5 + $0x27c] sm:$0xf]
    %v375 = vld [vmem:[%s2] sm:$0x1]
    %v377 = vlaneseq
    %v378 = vshrl.u32 %v377, 7
    %v379 = vsub.s32 0, %v378
    %v380 = vrot.slane %v375, %v379
    %v542 = vunpack.c.l.b16 %v215
    %v543 = vunpack.c.l.b16 %v216
    %v544 = vunpack.c.l.b16 %v217
    %v545 = vunpack.c.l.b16 %v218
    %v546 = vunpack.c.l.b16 %v219
    %v547 = vunpack.c.l.b16 %v220
    %v548 = vunpack.c.l.b16 %v221
    %v549 = vunpack.c.l.b16 %v222
    %v550 = vunpack.c.l.b16 %v223
    %v551 = vunpack.c.l.b16 %v224
    %v552 = vunpack.c.l.b16 %v225
    %v553 = vunpack.c.l.b16 %v226
    %v554 = vunpack.c.l.b16 %v227
    %v555 = vunpack.c.l.b16 %v228
    %v556 = vunpack.c.l.b16 %v229
    %v557 = vunpack.c.l.b16 %v230
    %v558 = vunpack.c.l.b16 %v231
    %v559 = vunpack.c.l.b16 %v232
    %v560 = vunpack.c.l.b16 %v233
    %v561 = vunpack.c.l.b16 %v234
    %v562 = vunpack.c.l.b16 %v235
    %v563 = vunpack.c.l.b16 %v236
    %v564 = vunpack.c.l.b16 %v237
    %v565 = vunpack.c.l.b16 %v238
    %v566 = vunpack.c.l.b16 %v239
    %v567 = vunpack.c.l.b16 %v240
    %v568 = vunpack.c.l.b16 %v241
    %v569 = vunpack.c.l.b16 %v242
    %v570 = vunpack.c.l.b16 %v243
    %v571 = vunpack.c.l.b16 %v244
    %v572 = vunpack.c.l.b16 %v245
    %v573 = vunpack.c.l.b16 %v246
    %v574 = vunpack.c.l.b16 %v247
    %v575 = vunpack.c.l.b16 %v248
    %v576 = vunpack.c.l.b16 %v249
    %v577 = vunpack.c.l.b16 %v250
    %v578 = vunpack.c.l.b16 %v251
    %v579 = vunpack.c.l.b16 %v252
    %v580 = vunpack.c.l.b16 %v253
    %v581 = vunpack.c.l.b16 %v254
    %v582 = vunpack.c.l.b16 %v255
    %v583 = vunpack.c.l.b16 %v256
    %v584 = vunpack.c.l.b16 %v257
    %v585 = vunpack.c.l.b16 %v258
    %v586 = vunpack.c.l.b16 %v259
    %v587 = vunpack.c.l.b16 %v260
    %v588 = vunpack.c.l.b16 %v261
    %v589 = vunpack.c.l.b16 %v262
    %v590 = vunpack.c.l.b16 %v263
    %v591 = vunpack.c.l.b16 %v264
    %v592 = vunpack.c.l.b16 %v265
    %v593 = vunpack.c.l.b16 %v266
    %v594 = vunpack.c.l.b16 %v267
    %v595 = vunpack.c.l.b16 %v268
    %v596 = vunpack.c.l.b16 %v269
    %v597 = vunpack.c.l.b16 %v270
    %v598 = vunpack.c.l.b16 %v271
    %v599 = vunpack.c.l.b16 %v272
    %v600 = vunpack.c.l.b16 %v273
    %v601 = vunpack.c.l.b16 %v274
    %v602 = vunpack.c.l.b16 %v275
    %v603 = vunpack.c.l.b16 %v276
    %v604 = vunpack.c.l.b16 %v277
    %v605 = vunpack.c.l.b16 %v278
    %v606 = vunpack.c.l.b16 %v279
    %v607 = vunpack.c.l.b16 %v280
    %v608 = vunpack.c.l.b16 %v281
    %v609 = vunpack.c.l.b16 %v282
    %v610 = vunpack.c.l.b16 %v283
    %v611 = vunpack.c.l.b16 %v284
    %v612 = vunpack.c.l.b16 %v285
    %v613 = vunpack.c.l.b16 %v286
    %v614 = vunpack.c.l.b16 %v287
    %v615 = vunpack.c.l.b16 %v288
    %v616 = vunpack.c.l.b16 %v289
    %v617 = vunpack.c.l.b16 %v290
    %v618 = vunpack.c.l.b16 %v291
    %v619 = vunpack.c.l.b16 %v292
    %v620 = vunpack.c.l.b16 %v293
    %v621 = vunpack.c.l.b16 %v294
    %v622 = vunpack.c.l.b16 %v295
    %v623 = vunpack.c.l.b16 %v296
    %v624 = vunpack.c.l.b16 %v297
    %v625 = vunpack.c.l.b16 %v298
    %v626 = vunpack.c.l.b16 %v299
    %v627 = vunpack.c.l.b16 %v300
    %v628 = vunpack.c.l.b16 %v301
    %v629 = vunpack.c.l.b16 %v302
    %v630 = vunpack.c.l.b16 %v303
    %v631 = vunpack.c.l.b16 %v304
    %v632 = vunpack.c.l.b16 %v305
    %v633 = vunpack.c.l.b16 %v306
    %v634 = vunpack.c.l.b16 %v307
    %v635 = vunpack.c.l.b16 %v308
    %v636 = vunpack.c.l.b16 %v309
    %v637 = vunpack.c.l.b16 %v310
    %v638 = vunpack.c.l.b16 %v311
    %v639 = vunpack.c.l.b16 %v312
    %v640 = vunpack.c.l.b16 %v313
    %v641 = vunpack.c.l.b16 %v314
    %v642 = vunpack.c.l.b16 %v315
    %v643 = vunpack.c.l.b16 %v316
    %v644 = vunpack.c.l.b16 %v317
    %v645 = vunpack.c.l.b16 %v318
    %v646 = vunpack.c.l.b16 %v319
    %v647 = vunpack.c.l.b16 %v320
    %v648 = vunpack.c.l.b16 %v321
    %v649 = vunpack.c.l.b16 %v322
    %v650 = vunpack.c.l.b16 %v323
    %v651 = vunpack.c.l.b16 %v324
    %v652 = vunpack.c.l.b16 %v325
    %v653 = vunpack.c.l.b16 %v326
    %v654 = vunpack.c.l.b16 %v327
    %v655 = vunpack.c.l.b16 %v328
    %v656 = vunpack.c.l.b16 %v329
    %v657 = vunpack.c.l.b16 %v330
    %v658 = vunpack.c.l.b16 %v331
    %v659 = vunpack.c.l.b16 %v332
    %v660 = vunpack.c.l.b16 %v333
    %v661 = vunpack.c.l.b16 %v334
    %v662 = vunpack.c.l.b16 %v335
    %v663 = vunpack.c.l.b16 %v336
    %v664 = vunpack.c.l.b16 %v337
    %v665 = vunpack.c.l.b16 %v338
    %v666 = vunpack.c.l.b16 %v339
    %v667 = vunpack.c.l.b16 %v340
    %v668 = vunpack.c.l.b16 %v341
    %v669 = vunpack.c.l.b16 %v342
    %v670 = vunpack.c.l.b16 %v343
    %v671 = vunpack.c.l.b16 %v344
    %v672 = vunpack.c.l.b16 %v345
    %v673 = vunpack.c.l.b16 %v346
    %v674 = vunpack.c.l.b16 %v347
    %v675 = vunpack.c.l.b16 %v348
    %v676 = vunpack.c.l.b16 %v349
    %v677 = vunpack.c.l.b16 %v350
    %v678 = vunpack.c.l.b16 %v351
    %v679 = vunpack.c.l.b16 %v352
    %v680 = vunpack.c.l.b16 %v353
    %v681 = vunpack.c.l.b16 %v354
    %v682 = vunpack.c.l.b16 %v355
    %v683 = vunpack.c.l.b16 %v356
    %v684 = vunpack.c.l.b16 %v357
    %v685 = vunpack.c.l.b16 %v358
    %v686 = vunpack.c.l.b16 %v359
    %v687 = vunpack.c.l.b16 %v360
    %v688 = vunpack.c.l.b16 %v361
    %v689 = vunpack.c.l.b16 %v362
    %v690 = vunpack.c.l.b16 %v363
    %v691 = vunpack.c.l.b16 %v364
    %v692 = vunpack.c.l.b16 %v365
    %v693 = vunpack.c.l.b16 %v366
    %v694 = vunpack.c.l.b16 %v367
    %v695 = vunpack.c.l.b16 %v368
    %v696 = vunpack.c.l.b16 %v369
    %v697 = vunpack.c.l.b16 %v370
    %v698 = vunpack.c.l.b16 %v371
    %v699 = vunpack.c.l.b16 %v372
    %v700 = vunpack.c.l.b16 %v373
    %v701 = vunpack.c.l.b16 %v374
    %v702 = vpack.c.b16 %v543, %v542
    %v703 = vpack.c.b16 %v545, %v544
    %v704 = vpack.c.b16 %v547, %v546
    %v705 = vpack.c.b16 %v549, %v548
    %v706 = vpack.c.b16 %v551, %v550
    %v707 = vpack.c.b16 %v553, %v552
    %v708 = vpack.c.b16 %v555, %v554
    %v709 = vpack.c.b16 %v557, %v556
    %v710 = vpack.c.b16 %v559, %v558
    %v711 = vpack.c.b16 %v561, %v560
    %v712 = vpack.c.b16 %v563, %v562
    %v713 = vpack.c.b16 %v565, %v564
    %v714 = vpack.c.b16 %v567, %v566
    %v715 = vpack.c.b16 %v569, %v568
    %v716 = vpack.c.b16 %v571, %v570
    %v717 = vpack.c.b16 %v573, %v572
    %v718 = vpack.c.b16 %v575, %v574
    %v719 = vpack.c.b16 %v577, %v576
    %v720 = vpack.c.b16 %v579, %v578
    %v721 = vpack.c.b16 %v581, %v580
    %v722 = vpack.c.b16 %v583, %v582
    %v723 = vpack.c.b16 %v585, %v584
    %v724 = vpack.c.b16 %v587, %v586
    %v725 = vpack.c.b16 %v589, %v588
    %v726 = vpack.c.b16 %v591, %v590
    %v727 = vpack.c.b16 %v593, %v592
    %v728 = vpack.c.b16 %v595, %v594
    %v729 = vpack.c.b16 %v597, %v596
    %v730 = vpack.c.b16 %v599, %v598
    %v731 = vpack.c.b16 %v601, %v600
    %v732 = vpack.c.b16 %v603, %v602
    %v733 = vpack.c.b16 %v605, %v604
    %v734 = vpack.c.b16 %v607, %v606
    %v735 = vpack.c.b16 %v609, %v608
    %v736 = vpack.c.b16 %v611, %v610
    %v737 = vpack.c.b16 %v613, %v612
    %v738 = vpack.c.b16 %v615, %v614
    %v739 = vpack.c.b16 %v617, %v616
    %v740 = vpack.c.b16 %v619, %v618
    %v741 = vpack.c.b16 %v621, %v620
    %v742 = vpack.c.b16 %v623, %v622
    %v743 = vpack.c.b16 %v625, %v624
    %v744 = vpack.c.b16 %v627, %v626
    %v745 = vpack.c.b16 %v629, %v628
    %v746 = vpack.c.b16 %v631, %v630
    %v747 = vpack.c.b16 %v633, %v632
    %v748 = vpack.c.b16 %v635, %v634
    %v749 = vpack.c.b16 %v637, %v636
    %v750 = vpack.c.b16 %v639, %v638
    %v751 = vpack.c.b16 %v641, %v640
    %v752 = vpack.c.b16 %v643, %v642
    %v753 = vpack.c.b16 %v645, %v644
    %v754 = vpack.c.b16 %v647, %v646
    %v755 = vpack.c.b16 %v649, %v648
    %v756 = vpack.c.b16 %v651, %v650
    %v757 = vpack.c.b16 %v653, %v652
    %v758 = vpack.c.b16 %v655, %v654
    %v759 = vpack.c.b16 %v657, %v656
    %v760 = vpack.c.b16 %v659, %v658
    %v761 = vpack.c.b16 %v661, %v660
    %v762 = vpack.c.b16 %v663, %v662
    %v763 = vpack.c.b16 %v665, %v664
    %v764 = vpack.c.b16 %v667, %v666
    %v765 = vpack.c.b16 %v669, %v668
    %v766 = vpack.c.b16 %v671, %v670
    %v767 = vpack.c.b16 %v673, %v672
    %v768 = vpack.c.b16 %v675, %v674
    %v769 = vpack.c.b16 %v677, %v676
    %v770 = vpack.c.b16 %v679, %v678
    %v771 = vpack.c.b16 %v681, %v680
    %v772 = vpack.c.b16 %v683, %v682
    %v773 = vpack.c.b16 %v685, %v684
    %v774 = vpack.c.b16 %v687, %v686
    %v775 = vpack.c.b16 %v689, %v688
    %v776 = vpack.c.b16 %v691, %v690
    %v777 = vpack.c.b16 %v693, %v692
    %v778 = vpack.c.b16 %v695, %v694
    %v779 = vpack.c.b16 %v697, %v696
    %v780 = vpack.c.b16 %v699, %v698
    %v781 = vpack.c.b16 %v701, %v700
    %862 = vmatprep.subr.bf16.mxu0 0
    %863 = vmatpush1.bf16.msra.mxu0 %v709
    %864 = vmatprep.subr.bf16.mxu0 0
    %865 = vmatpush1.bf16.msra.mxu0 %v708
    %866 = vmatprep.subr.bf16.mxu0 0
    %867 = vmatpush1.bf16.msra.mxu0 %v707
    %868 = vmatprep.subr.bf16.mxu0 0
    %869 = vmatpush1.bf16.msra.mxu0 %v706
    %870 = vmatprep.subr.bf16.mxu0 0
    %871 = vmatpush1.bf16.msra.mxu0 %v705
    %872 = vmatprep.subr.bf16.mxu0 0
    %873 = vmatpush1.bf16.msra.mxu0 %v704
    %874 = vmatprep.subr.bf16.mxu0 0
    %875 = vmatpush1.bf16.msra.mxu0 %v703
    %876 = vmatprep.subr.bf16.mxu0 0
    %877 = vmatpush1.bf16.msra.mxu0 %v702
    %878 = vmatprep.subr.bf16.mxu0 0
    %879 = vmatpush2.bf16.msra.mxu0 %v717
    %880 = vmatprep.subr.bf16.mxu0 0
    %881 = vmatpush2.bf16.msra.mxu0 %v716
    %882 = vmatprep.subr.bf16.mxu0 0
    %883 = vmatpush2.bf16.msra.mxu0 %v715
    %884 = vmatprep.subr.bf16.mxu0 0
    %885 = vmatpush2.bf16.msra.mxu0 %v714
    %886 = vmatprep.subr.bf16.mxu0 0
    %887 = vmatpush2.bf16.msra.mxu0 %v713
    %888 = vmatprep.subr.bf16.mxu0 0
    %889 = vmatpush2.bf16.msra.mxu0 %v712
    %890 = vmatprep.subr.bf16.mxu0 0
    %891 = vmatpush2.bf16.msra.mxu0 %v711
    %892 = vmatprep.subr.bf16.mxu0 0
    %893 = vmatpush2.bf16.msra.mxu0 %v710
    %894 = vmatprep.mubr.bf16.mxu0 %v176
    %895 = vmatmul.mubr.bf16.gmra.mxu0 %v175
    %v896 = vpop.f32.mrf.mxu0
    %v897 = vadd.f32 %v380, %v896
    %v898 = vpop.f32.mrf.mxu0
    %v899 = vpop.f32.mrf.mxu0
    %v900 = vadd.f32 %v380, %v899
    %v901 = vpop.f32.mrf.mxu0
    %902 = vmatprep.mubr.bf16.mxu0 %v186
    %903 = vmatmul.mubr.bf16.gmra.mxu0 %v185
    %v904 = vpop.f32.mrf.mxu0
    %v905 = vadd.f32 %v380, %v904
    %v906 = vpop.f32.mrf.mxu0
    %v907 = vpop.f32.mrf.mxu0
    %v908 = vadd.f32 %v380, %v907
    %v909 = vpop.f32.mrf.mxu0
    %910 = vmatprep.mubr.bf16.mxu0 %v196
    %911 = vmatmul.mubr.bf16.gmra.mxu0 %v195
    %v912 = vpop.f32.mrf.mxu0
    %v913 = vadd.f32 %v380, %v912
    %v914 = vpop.f32.mrf.mxu0
    %v915 = vpop.f32.mrf.mxu0
    %v916 = vadd.f32 %v380, %v915
    %v917 = vpop.f32.mrf.mxu0
    %918 = vmatprep.mubr.bf16.mxu0 %v206
    %919 = vmatmul.mubr.bf16.gmra.mxu0 %v205
    %v920 = vpop.f32.mrf.mxu0
    %v921 = vadd.f32 %v380, %v920
    %v922 = vpop.f32.mrf.mxu0
    %v923 = vpop.f32.mrf.mxu0
    %v924 = vadd.f32 %v380, %v923
    %v925 = vpop.f32.mrf.mxu0
    %926 = vdwg.mxu0
    %927 = vmatprep.subr.bf16.mxu0 0
    %928 = vmatpush1.bf16.msra.mxu0 %v725
    %929 = vmatprep.subr.bf16.mxu0 0
    %930 = vmatpush1.bf16.msra.mxu0 %v724
    %931 = vmatprep.subr.bf16.mxu0 0
    %932 = vmatpush1.bf16.msra.mxu0 %v723
    %933 = vmatprep.subr.bf16.mxu0 0
    %934 = vmatpush1.bf16.msra.mxu0 %v722
    %935 = vmatprep.subr.bf16.mxu0 0
    %936 = vmatpush1.bf16.msra.mxu0 %v721
    %937 = vmatprep.subr.bf16.mxu0 0
    %938 = vmatpush1.bf16.msra.mxu0 %v720
    %939 = vmatprep.subr.bf16.mxu0 0
    %940 = vmatpush1.bf16.msra.mxu0 %v719
    %941 = vmatprep.subr.bf16.mxu0 0
    %942 = vmatpush1.bf16.msra.mxu0 %v718
    %943 = vmatprep.subr.bf16.mxu0 0
    %944 = vmatpush2.bf16.msra.mxu0 %v733
    %945 = vmatprep.subr.bf16.mxu0 0
    %946 = vmatpush2.bf16.msra.mxu0 %v732
    %947 = vmatprep.subr.bf16.mxu0 0
    %948 = vmatpush2.bf16.msra.mxu0 %v731
    %949 = vmatprep.subr.bf16.mxu0 0
    %950 = vmatpush2.bf16.msra.mxu0 %v730
    %951 = vmatprep.subr.bf16.mxu0 0
    %952 = vmatpush2.bf16.msra.mxu0 %v729
    %953 = vmatprep.subr.bf16.mxu0 0
    %954 = vmatpush2.bf16.msra.mxu0 %v728
    %955 = vmatprep.subr.bf16.mxu0 0
    %956 = vmatpush2.bf16.msra.mxu0 %v727
    %957 = vmatprep.subr.bf16.mxu0 0
    %958 = vmatpush2.bf16.msra.mxu0 %v726
    %959 = vmatprep.mubr.bf16.mxu0 %v178
    %960 = vmatmul.mubr.bf16.gmra.mxu0 %v177
    %v961 = vpop.f32.mrf.mxu0
    %v962 = vadd.f32 %v897, %v961
    %v963 = vpop.f32.mrf.mxu0
    %v964 = vpop.f32.mrf.mxu0
    %v965 = vadd.f32 %v900, %v964
    %v966 = vpop.f32.mrf.mxu0
    %967 = vmatprep.mubr.bf16.mxu0 %v188
    %968 = vmatmul.mubr.bf16.gmra.mxu0 %v187
    %v969 = vpop.f32.mrf.mxu0
    %v970 = vadd.f32 %v905, %v969
    %v971 = vpop.f32.mrf.mxu0
    %v972 = vpop.f32.mrf.mxu0
    %v973 = vadd.f32 %v908, %v972
    %v974 = vpop.f32.mrf.mxu0
    %975 = vmatprep.mubr.bf16.mxu0 %v198
    %976 = vmatmul.mubr.bf16.gmra.mxu0 %v197
    %v977 = vpop.f32.mrf.mxu0
    %v978 = vadd.f32 %v913, %v977
    %v979 = vpop.f32.mrf.mxu0
    %v980 = vpop.f32.mrf.mxu0
    %v981 = vadd.f32 %v916, %v980
    %v982 = vpop.f32.mrf.mxu0
    %983 = vmatprep.mubr.bf16.mxu0 %v208
    %984 = vmatmul.mubr.bf16.gmra.mxu0 %v207
    %v985 = vpop.f32.mrf.mxu0
    %v986 = vadd.f32 %v921, %v985
    %v987 = vpop.f32.mrf.mxu0
    %v988 = vpop.f32.mrf.mxu0
    %v989 = vadd.f32 %v924, %v988
    %v990 = vpop.f32.mrf.mxu0
    %991 = vdwg.mxu0
    %992 = vmatprep.subr.bf16.mxu0 0
    %993 = vmatpush1.bf16.msra.mxu0 %v741
    %994 = vmatprep.subr.bf16.mxu0 0
    %995 = vmatpush1.bf16.msra.mxu0 %v740
    %996 = vmatprep.subr.bf16.mxu0 0
    %997 = vmatpush1.bf16.msra.mxu0 %v739
    %998 = vmatprep.subr.bf16.mxu0 0
    %999 = vmatpush1.bf16.msra.mxu0 %v738
    %1000 = vmatprep.subr.bf16.mxu0 0
    %1001 = vmatpush1.bf16.msra.mxu0 %v737
    %1002 = vmatprep.subr.bf16.mxu0 0
    %1003 = vmatpush1.bf16.msra.mxu0 %v736
    %1004 = vmatprep.subr.bf16.mxu0 0
    %1005 = vmatpush1.bf16.msra.mxu0 %v735
    %1006 = vmatprep.subr.bf16.mxu0 0
    %1007 = vmatpush1.bf16.msra.mxu0 %v734
    %1008 = vmatprep.subr.bf16.mxu0 0
    %1009 = vmatpush2.bf16.msra.mxu0 %v749
    %1010 = vmatprep.subr.bf16.mxu0 0
    %1011 = vmatpush2.bf16.msra.mxu0 %v748
    %1012 = vmatprep.subr.bf16.mxu0 0
    %1013 = vmatpush2.bf16.msra.mxu0 %v747
    %1014 = vmatprep.subr.bf16.mxu0 0
    %1015 = vmatpush2.bf16.msra.mxu0 %v746
    %1016 = vmatprep.subr.bf16.mxu0 0
    %1017 = vmatpush2.bf16.msra.mxu0 %v745
    %1018 = vmatprep.subr.bf16.mxu0 0
    %1019 = vmatpush2.bf16.msra.mxu0 %v744
    %1020 = vmatprep.subr.bf16.mxu0 0
    %1021 = vmatpush2.bf16.msra.mxu0 %v743
    %1022 = vmatprep.subr.bf16.mxu0 0
    %1023 = vmatpush2.bf16.msra.mxu0 %v742
    %1024 = vmatprep.mubr.bf16.mxu0 %v180
    %1025 = vmatmul.mubr.bf16.gmra.mxu0 %v179
    %v1026 = vpop.f32.mrf.mxu0
    %v1027 = vadd.f32 %v962, %v1026
    %v1028 = vpop.f32.mrf.mxu0
    %v1029 = vpop.f32.mrf.mxu0
    %v1030 = vadd.f32 %v965, %v1029
    %v1031 = vpop.f32.mrf.mxu0
    %1032 = vmatprep.mubr.bf16.mxu0 %v190
    %1033 = vmatmul.mubr.bf16.gmra.mxu0 %v189
    %v1034 = vpop.f32.mrf.mxu0
    %v1035 = vadd.f32 %v970, %v1034
    %v1036 = vpop.f32.mrf.mxu0
    %v1037 = vpop.f32.mrf.mxu0
    %v1038 = vadd.f32 %v973, %v1037
    %v1039 = vpop.f32.mrf.mxu0
    %1040 = vmatprep.mubr.bf16.mxu0 %v200
    %1041 = vmatmul.mubr.bf16.gmra.mxu0 %v199
    %v1042 = vpop.f32.mrf.mxu0
    %v1043 = vadd.f32 %v978, %v1042
    %v1044 = vpop.f32.mrf.mxu0
    %v1045 = vpop.f32.mrf.mxu0
    %v1046 = vadd.f32 %v981, %v1045
    %v1047 = vpop.f32.mrf.mxu0
    %1048 = vmatprep.mubr.bf16.mxu0 %v210
    %1049 = vmatmul.mubr.bf16.gmra.mxu0 %v209
    %v1050 = vpop.f32.mrf.mxu0
    %v1051 = vadd.f32 %v986, %v1050
    %v1052 = vpop.f32.mrf.mxu0
    %v1053 = vpop.f32.mrf.mxu0
    %v1054 = vadd.f32 %v989, %v1053
    %v1055 = vpop.f32.mrf.mxu0
    %1056 = vdwg.mxu0
    %1057 = vmatprep.subr.bf16.mxu0 0
    %1058 = vmatpush1.bf16.msra.mxu0 %v757
    %1059 = vmatprep.subr.bf16.mxu0 0
    %1060 = vmatpush1.bf16.msra.mxu0 %v756
    %1061 = vmatprep.subr.bf16.mxu0 0
    %1062 = vmatpush1.bf16.msra.mxu0 %v755
    %1063 = vmatprep.subr.bf16.mxu0 0
    %1064 = vmatpush1.bf16.msra.mxu0 %v754
    %1065 = vmatprep.subr.bf16.mxu0 0
    %1066 = vmatpush1.bf16.msra.mxu0 %v753
    %1067 = vmatprep.subr.bf16.mxu0 0
    %1068 = vmatpush1.bf16.msra.mxu0 %v752
    %1069 = vmatprep.subr.bf16.mxu0 0
    %1070 = vmatpush1.bf16.msra.mxu0 %v751
    %1071 = vmatprep.subr.bf16.mxu0 0
    %1072 = vmatpush1.bf16.msra.mxu0 %v750
    %1073 = vmatprep.subr.bf16.mxu0 0
    %1074 = vmatpush2.bf16.msra.mxu0 %v765
    %1075 = vmatprep.subr.bf16.mxu0 0
    %1076 = vmatpush2.bf16.msra.mxu0 %v764
    %1077 = vmatprep.subr.bf16.mxu0 0
    %1078 = vmatpush2.bf16.msra.mxu0 %v763
    %1079 = vmatprep.subr.bf16.mxu0 0
    %1080 = vmatpush2.bf16.msra.mxu0 %v762
    %1081 = vmatprep.subr.bf16.mxu0 0
    %1082 = vmatpush2.bf16.msra.mxu0 %v761
    %1083 = vmatprep.subr.bf16.mxu0 0
    %1084 = vmatpush2.bf16.msra.mxu0 %v760
    %1085 = vmatprep.subr.bf16.mxu0 0
    %1086 = vmatpush2.bf16.msra.mxu0 %v759
    %1087 = vmatprep.subr.bf16.mxu0 0
    %1088 = vmatpush2.bf16.msra.mxu0 %v758
    %1089 = vmatprep.mubr.bf16.mxu0 %v182
    %1090 = vmatmul.mubr.bf16.gmra.mxu0 %v181
    %v1091 = vpop.f32.mrf.mxu0
    %v1092 = vadd.f32 %v1027, %v1091
    %v1093 = vpop.f32.mrf.mxu0
    %v1094 = vpop.f32.mrf.mxu0
    %v1095 = vadd.f32 %v1030, %v1094
    %v1096 = vpop.f32.mrf.mxu0
    %1097 = vmatprep.mubr.bf16.mxu0 %v192
    %1098 = vmatmul.mubr.bf16.gmra.mxu0 %v191
    %v1099 = vpop.f32.mrf.mxu0
    %v1100 = vadd.f32 %v1035, %v1099
    %v1101 = vpop.f32.mrf.mxu0
    %v1102 = vpop.f32.mrf.mxu0
    %v1103 = vadd.f32 %v1038, %v1102
    %v1104 = vpop.f32.mrf.mxu0
    %1105 = vmatprep.mubr.bf16.mxu0 %v202
    %1106 = vmatmul.mubr.bf16.gmra.mxu0 %v201
    %v1107 = vpop.f32.mrf.mxu0
    %v1108 = vadd.f32 %v1043, %v1107
    %v1109 = vpop.f32.mrf.mxu0
    %v1110 = vpop.f32.mrf.mxu0
    %v1111 = vadd.f32 %v1046, %v1110
    %v1112 = vpop.f32.mrf.mxu0
    %1113 = vmatprep.mubr.bf16.mxu0 %v212
    %1114 = vmatmul.mubr.bf16.gmra.mxu0 %v211
    %v1115 = vpop.f32.mrf.mxu0
    %v1116 = vadd.f32 %v1051, %v1115
    %v1117 = vpop.f32.mrf.mxu0
    %v1118 = vpop.f32.mrf.mxu0
    %v1119 = vadd.f32 %v1054, %v1118
    %v1120 = vpop.f32.mrf.mxu0
    %1121 = vdwg.mxu0
    %1122 = vmatprep.subr.bf16.mxu0 0
    %1123 = vmatpush1.bf16.msra.mxu0 %v773
    %1124 = vmatprep.subr.bf16.mxu0 0
    %1125 = vmatpush1.bf16.msra.mxu0 %v772
    %1126 = vmatprep.subr.bf16.mxu0 0
    %1127 = vmatpush1.bf16.msra.mxu0 %v771
    %1128 = vmatprep.subr.bf16.mxu0 0
    %1129 = vmatpush1.bf16.msra.mxu0 %v770
    %1130 = vmatprep.subr.bf16.mxu0 0
    %1131 = vmatpush1.bf16.msra.mxu0 %v769
    %1132 = vmatprep.subr.bf16.mxu0 0
    %1133 = vmatpush1.bf16.msra.mxu0 %v768
    %1134 = vmatprep.subr.bf16.mxu0 0
    %1135 = vmatpush1.bf16.msra.mxu0 %v767
    %1136 = vmatprep.subr.bf16.mxu0 0
    %1137 = vmatpush1.bf16.msra.mxu0 %v766
    %1138 = vmatprep.subr.bf16.mxu0 0
    %1139 = vmatpush2.bf16.msra.mxu0 %v781
    %1140 = vmatprep.subr.bf16.mxu0 0
    %1141 = vmatpush2.bf16.msra.mxu0 %v780
    %1142 = vmatprep.subr.bf16.mxu0 0
    %1143 = vmatpush2.bf16.msra.mxu0 %v779
    %1144 = vmatprep.subr.bf16.mxu0 0
    %1145 = vmatpush2.bf16.msra.mxu0 %v778
    %1146 = vmatprep.subr.bf16.mxu0 0
    %1147 = vmatpush2.bf16.msra.mxu0 %v777
    %1148 = vmatprep.subr.bf16.mxu0 0
    %1149 = vmatpush2.bf16.msra.mxu0 %v776
    %1150 = vmatprep.subr.bf16.mxu0 0
    %1151 = vmatpush2.bf16.msra.mxu0 %v775
    %1152 = vmatprep.subr.bf16.mxu0 0
    %1153 = vmatpush2.bf16.msra.mxu0 %v774
    %1154 = vmatprep.mubr.bf16.mxu0 %v184
    %1155 = vmatmul.mubr.bf16.gmra.mxu0 %v183
    %v1156 = vpop.f32.mrf.mxu0
    %v1157 = vadd.f32 %v1092, %v1156
    %v1158 = vpop.f32.mrf.mxu0
    %v1159 = vpop.f32.mrf.mxu0
    %v1160 = vadd.f32 %v1095, %v1159
    %v1161 = vpop.f32.mrf.mxu0
    %1162 = vmatprep.mubr.bf16.mxu0 %v194
    %1163 = vmatmul.mubr.bf16.gmra.mxu0 %v193
    %v1164 = vpop.f32.mrf.mxu0
    %v1165 = vadd.f32 %v1100, %v1164
    %v1166 = vpop.f32.mrf.mxu0
    %v1167 = vpop.f32.mrf.mxu0
    %v1168 = vadd.f32 %v1103, %v1167
    %v1169 = vpop.f32.mrf.mxu0
    %1170 = vmatprep.mubr.bf16.mxu0 %v204
    %1171 = vmatmul.mubr.bf16.gmra.mxu0 %v203
    %v1172 = vpop.f32.mrf.mxu0
    %v1173 = vadd.f32 %v1108, %v1172
    %v1174 = vpop.f32.mrf.mxu0
    %v1175 = vpop.f32.mrf.mxu0
    %v1176 = vadd.f32 %v1111, %v1175
    %v1177 = vpop.f32.mrf.mxu0
    %1178 = vmatprep.mubr.bf16.mxu0 %v214
    %1179 = vmatmul.mubr.bf16.gmra.mxu0 %v213
    %v1180 = vpop.f32.mrf.mxu0
    %v1181 = vadd.f32 %v1116, %v1180
    %v1182 = vpop.f32.mrf.mxu0
    %v1183 = vpop.f32.mrf.mxu0
    %v1184 = vadd.f32 %v1119, %v1183
    %v1185 = vpop.f32.mrf.mxu0
    %1186 = vdwg.mxu0
    %v1187 = vld [vmem:[%s3] sm:$0x1]
    %v1188 = vld [vmem:[%s4] sm:$0x1]
    %1189 = vadd.xlane.f32.xlu0 %v1157
    %v1190 = vpop.xlane.xlu0 %1189
    %1191 = vadd.xlane.f32.xlu0 %v1160
    %v1192 = vpop.xlane.xlu0 %1191
    %1193 = vadd.xlane.f32.xlu0 %v1165
    %v1194 = vpop.xlane.xlu0 %1193
    %1195 = vadd.xlane.f32.xlu0 %v1168
    %v1196 = vpop.xlane.xlu0 %1195
    %1197 = vadd.xlane.f32.xlu0 %v1173
    %v1198 = vpop.xlane.xlu0 %1197
    %1199 = vadd.xlane.f32.xlu0 %v1176
    %v1200 = vpop.xlane.xlu0 %1199
    %1201 = vadd.xlane.f32.xlu0 %v1181
    %v1202 = vpop.xlane.xlu0 %1201
    %1203 = vadd.xlane.f32.xlu0 %v1184
    %v1204 = vpop.xlane.xlu0 %1203
    %v1205 = vmul.f32 %v1190, 0.03125
    %v1206 = vmul.f32 %v1192, 0.03125
    %v1207 = vmul.f32 %v1194, 0.03125
    %v1208 = vmul.f32 %v1196, 0.03125
    %v1209 = vmul.f32 %v1198, 0.03125
    %v1210 = vmul.f32 %v1200, 0.03125
    %v1211 = vmul.f32 %v1202, 0.03125
    %v1212 = vmul.f32 %v1204, 0.03125
    %v1213 = vmul.f32 %v1157, %v1157
    %v1214 = vmul.f32 %v1160, %v1160
    %v1215 = vmul.f32 %v1165, %v1165
    %v1216 = vmul.f32 %v1168, %v1168
    %v1217 = vmul.f32 %v1173, %v1173
    %v1218 = vmul.f32 %v1176, %v1176
    %v1219 = vmul.f32 %v1181, %v1181
    %v1220 = vmul.f32 %v1184, %v1184
    %1221 = vadd.xlane.f32.xlu0 %v1213
    %v1222 = vpop.xlane.xlu0 %1221
    %1223 = vadd.xlane.f32.xlu0 %v1214
    %v1224 = vpop.xlane.xlu0 %1223
    %1225 = vadd.xlane.f32.xlu0 %v1215
    %v1226 = vpop.xlane.xlu0 %1225
    %1227 = vadd.xlane.f32.xlu0 %v1216
    %v1228 = vpop.xlane.xlu0 %1227
    %1229 = vadd.xlane.f32.xlu0 %v1217
    %v1230 = vpop.xlane.xlu0 %1229
    %1231 = vadd.xlane.f32.xlu0 %v1218
    %v1232 = vpop.xlane.xlu0 %1231
    %1233 = vadd.xlane.f32.xlu0 %v1219
    %v1234 = vpop.xlane.xlu0 %1233
    %1235 = vadd.xlane.f32.xlu0 %v1220
    %v1236 = vpop.xlane.xlu0 %1235
    %v1237 = vmul.f32 %v1222, 0.03125
    %v1238 = vmul.f32 %v1224, 0.03125
    %v1239 = vmul.f32 %v1226, 0.03125
    %v1240 = vmul.f32 %v1228, 0.03125
    %v1241 = vmul.f32 %v1230, 0.03125
    %v1242 = vmul.f32 %v1232, 0.03125
    %v1243 = vmul.f32 %v1234, 0.03125
    %v1244 = vmul.f32 %v1236, 0.03125
    %v1245 = vmul.f32 %v1205, %v1205
    %v1246 = vmul.f32 %v1206, %v1206
    %v1247 = vmul.f32 %v1207, %v1207
    %v1248 = vmul.f32 %v1208, %v1208
    %v1249 = vmul.f32 %v1209, %v1209
    %v1250 = vmul.f32 %v1210, %v1210
    %v1251 = vmul.f32 %v1211, %v1211
    %v1252 = vmul.f32 %v1212, %v1212
    %v1253 = vsub.f32 %v1237, %v1245
    %v1254 = vsub.f32 %v1238, %v1246
    %v1255 = vsub.f32 %v1239, %v1247
    %v1256 = vsub.f32 %v1240, %v1248
    %v1257 = vsub.f32 %v1241, %v1249
    %v1258 = vsub.f32 %v1242, %v1250
    %v1259 = vsub.f32 %v1243, %v1251
    %v1260 = vsub.f32 %v1244, %v1252
    %v1261 = vmax.f32 %v1253, 0.0
    %v1262 = vmax.f32 %v1254, 0.0
    %v1263 = vmax.f32 %v1255, 0.0
    %v1264 = vmax.f32 %v1256, 0.0
    %v1265 = vmax.f32 %v1257, 0.0
    %v1266 = vmax.f32 %v1258, 0.0
    %v1267 = vmax.f32 %v1259, 0.0
    %v1268 = vmax.f32 %v1260, 0.0
    %v1269 = vsub.f32 %v1157, %v1205
    %v1270 = vsub.f32 %v1160, %v1206
    %v1271 = vsub.f32 %v1165, %v1207
    %v1272 = vsub.f32 %v1168, %v1208
    %v1273 = vsub.f32 %v1173, %v1209
    %v1274 = vsub.f32 %v1176, %v1210
    %v1275 = vsub.f32 %v1181, %v1211
    %v1276 = vsub.f32 %v1184, %v1212
    %v1277 = vadd.f32 %v1261, 1e-05
    %v1278 = vadd.f32 %v1262, 1e-05
    %v1279 = vadd.f32 %v1263, 1e-05
    %v1280 = vadd.f32 %v1264, 1e-05
    %v1281 = vadd.f32 %v1265, 1e-05
    %v1282 = vadd.f32 %v1266, 1e-05
    %v1283 = vadd.f32 %v1267, 1e-05
    %v1284 = vadd.f32 %v1268, 1e-05
    %v1285 = vrsqrt.pop %v1277
    %v1286 = vrsqrt.pop %v1278
    %v1287 = vrsqrt.pop %v1279
    %v1288 = vrsqrt.pop %v1280
    %v1289 = vrsqrt.pop %v1281
    %v1290 = vrsqrt.pop %v1282
    %v1291 = vrsqrt.pop %v1283
    %v1292 = vrsqrt.pop %v1284
    %v1293 = vmul.f32 %v1269, %v1285
    %v1294 = vmul.f32 %v1270, %v1286
    %v1295 = vmul.f32 %v1271, %v1287
    %v1296 = vmul.f32 %v1272, %v1288
    %v1297 = vmul.f32 %v1273, %v1289
    %v1298 = vmul.f32 %v1274, %v1290
    %v1299 = vmul.f32 %v1275, %v1291
    %v1300 = vmul.f32 %v1276, %v1292
    %v1302 = vlaneseq
    %v1303 = vshrl.u32 %v1302, 7
    %v1304 = vsub.s32 0, %v1303
    %v1305 = vrot.slane %v1187, %v1304
    %v1307 = vmul.f32 %v1293, %v1305
    %v1308 = vmul.f32 %v1294, %v1305
    %v1309 = vmul.f32 %v1295, %v1305
    %v1310 = vmul.f32 %v1296, %v1305
    %v1311 = vmul.f32 %v1297, %v1305
    %v1312 = vmul.f32 %v1298, %v1305
    %v1313 = vmul.f32 %v1299, %v1305
    %v1314 = vmul.f32 %v1300, %v1305
    %v1316 = vlaneseq
    %v1317 = vshrl.u32 %v1316, 7
    %v1318 = vsub.s32 0, %v1317
    %v1319 = vrot.slane %v1188, %v1318
    %v1321 = vadd.f32 %v1307, %v1319
    %v1322 = vadd.f32 %v1308, %v1319
    %v1323 = vadd.f32 %v1309, %v1319
    %v1324 = vadd.f32 %v1310, %v1319
    %v1325 = vadd.f32 %v1311, %v1319
    %v1326 = vadd.f32 %v1312, %v1319
    %v1327 = vadd.f32 %v1313, %v1319
    %v1328 = vadd.f32 %v1314, %v1319
    %v1329 = vmax.f32 %v1321, 0.0
    %v1330 = vmax.f32 %v1322, 0.0
    %v1331 = vmax.f32 %v1323, 0.0
    %v1332 = vmax.f32 %v1324, 0.0
    %v1333 = vmax.f32 %v1325, 0.0
    %v1334 = vmax.f32 %v1326, 0.0
    %v1335 = vmax.f32 %v1327, 0.0
    %v1336 = vmax.f32 %v1328, 0.0
    %v1337 = vpack.c.bf16 %v1330, %v1329
    %v1338 = vpack.c.bf16 %v1332, %v1331
    %v1339 = vpack.c.bf16 %v1334, %v1333
    %v1340 = vpack.c.bf16 %v1336, %v1335
    %v1341 = vld [vmem:[#allocation7] sm:$0xf]
    %v1342 = vld [vmem:[#allocation7 + $0x4] sm:$0xf]
    %v1343 = vld [vmem:[#allocation7 + $0x8] sm:$0xf]
    %v1344 = vld [vmem:[#allocation7 + $0xc] sm:$0xf]
    %v1345 = vld [vmem:[#allocation7 + $0x10] sm:$0xf]
    %v1346 = vld [vmem:[#allocation7 + $0x14] sm:$0xf]
    %v1347 = vld [vmem:[#allocation7 + $0x18] sm:$0xf]
    %v1348 = vld [vmem:[#allocation7 + $0x1c] sm:$0xf]
    %v1349 = vld [vmem:[#allocation7 + $0x20] sm:$0xf]
    %v1350 = vld [vmem:[#allocation7 + $0x24] sm:$0xf]
    %v1351 = vld [vmem:[#allocation7 + $0x28] sm:$0xf]
    %v1352 = vld [vmem:[#allocation7 + $0x2c] sm:$0xf]
    %v1353 = vld [vmem:[#allocation7 + $0x30] sm:$0xf]
    %v1354 = vld [vmem:[#allocation7 + $0x34] sm:$0xf]
    %v1355 = vld [vmem:[#allocation7 + $0x38] sm:$0xf]
    %v1356 = vld [vmem:[#allocation7 + $0x3c] sm:$0xf]
    %v1357 = vld [vmem:[%s6] sm:$0x1]
    %v1359 = vlaneseq
    %v1360 = vshrl.u32 %v1359, 7
    %v1361 = vsub.s32 0, %v1360
    %v1362 = vrot.slane %v1357, %v1361
    %v1380 = vunpack.c.l.b16 %v1341
    %v1381 = vunpack.c.l.b16 %v1342
    %v1382 = vunpack.c.l.b16 %v1343
    %v1383 = vunpack.c.l.b16 %v1344
    %v1384 = vunpack.c.l.b16 %v1345
    %v1385 = vunpack.c.l.b16 %v1346
    %v1386 = vunpack.c.l.b16 %v1347
    %v1387 = vunpack.c.l.b16 %v1348
    %v1388 = vunpack.c.l.b16 %v1349
    %v1389 = vunpack.c.l.b16 %v1350
    %v1390 = vunpack.c.l.b16 %v1351
    %v1391 = vunpack.c.l.b16 %v1352
    %v1392 = vunpack.c.l.b16 %v1353
    %v1393 = vunpack.c.l.b16 %v1354
    %v1394 = vunpack.c.l.b16 %v1355
    %v1395 = vunpack.c.l.b16 %v1356
    %v1396 = vpack.c.b16 %v1381, %v1380
    %v1397 = vpack.c.b16 %v1383, %v1382
    %v1398 = vpack.c.b16 %v1385, %v1384
    %v1399 = vpack.c.b16 %v1387, %v1386
    %v1400 = vpack.c.b16 %v1389, %v1388
    %v1401 = vpack.c.b16 %v1391, %v1390
    %v1402 = vpack.c.b16 %v1393, %v1392
    %v1403 = vpack.c.b16 %v1395, %v1394
    %1412 = vmatprep.subr.bf16.mxu0 0
    %1413 = vmatpush1.bf16.msra.mxu0 %v1403
    %1414 = vmatprep.subr.bf16.mxu0 0
    %1415 = vmatpush1.bf16.msra.mxu0 %v1402
    %1416 = vmatprep.subr.bf16.mxu0 0
    %1417 = vmatpush1.bf16.msra.mxu0 %v1401
    %1418 = vmatprep.subr.bf16.mxu0 0
    %1419 = vmatpush1.bf16.msra.mxu0 %v1400
    %1420 = vmatprep.subr.bf16.mxu0 0
    %1421 = vmatpush1.bf16.msra.mxu0 %v1399
    %1422 = vmatprep.subr.bf16.mxu0 0
    %1423 = vmatpush1.bf16.msra.mxu0 %v1398
    %1424 = vmatprep.subr.bf16.mxu0 0
    %1425 = vmatpush1.bf16.msra.mxu0 %v1397
    %1426 = vmatprep.subr.bf16.mxu0 0
    %1427 = vmatpush1.bf16.msra.mxu0 %v1396
    %1428 = vmatprep.subr.bf16.mxu0 0
    %1429 = vmatpush2.bf16.msra.mxu0 0
    %1430 = vmatprep.subr.bf16.mxu0 0
    %1431 = vmatpush2.bf16.msra.mxu0 0
    %1432 = vmatprep.subr.bf16.mxu0 0
    %1433 = vmatpush2.bf16.msra.mxu0 0
    %1434 = vmatprep.subr.bf16.mxu0 0
    %1435 = vmatpush2.bf16.msra.mxu0 0
    %1436 = vmatprep.subr.bf16.mxu0 0
    %1437 = vmatpush2.bf16.msra.mxu0 0
    %1438 = vmatprep.subr.bf16.mxu0 0
    %1439 = vmatpush2.bf16.msra.mxu0 0
    %1440 = vmatprep.subr.bf16.mxu0 0
    %1441 = vmatpush2.bf16.msra.mxu0 0
    %1442 = vmatprep.subr.bf16.mxu0 0
    %1443 = vmatpush2.bf16.msra.mxu0 0
    %1444 = vmatprep.mubr.bf16.mxu0 0
    %1445 = vmatmul.mubr.bf16.gmra.mxu0 %v1337
    %v1446 = vpop.f32.mrf.mxu0
    %v1447 = vadd.f32 %v1362, %v1446
    %v1448 = vpop.f32.mrf.mxu0
    %v1449 = vpop.f32.mrf.mxu0
    %v1450 = vadd.f32 %v1362, %v1449
    %v1451 = vpop.f32.mrf.mxu0
    %1452 = vmatprep.mubr.bf16.mxu0 0
    %1453 = vmatmul.mubr.bf16.gmra.mxu0 %v1338
    %v1454 = vpop.f32.mrf.mxu0
    %v1455 = vadd.f32 %v1362, %v1454
    %v1456 = vpop.f32.mrf.mxu0
    %v1457 = vpop.f32.mrf.mxu0
    %v1458 = vadd.f32 %v1362, %v1457
    %v1459 = vpop.f32.mrf.mxu0
    %1460 = vmatprep.mubr.bf16.mxu0 0
    %1461 = vmatmul.mubr.bf16.gmra.mxu0 %v1339
    %v1462 = vpop.f32.mrf.mxu0
    %v1463 = vadd.f32 %v1362, %v1462
    %v1464 = vpop.f32.mrf.mxu0
    %v1465 = vpop.f32.mrf.mxu0
    %v1466 = vadd.f32 %v1362, %v1465
    %v1467 = vpop.f32.mrf.mxu0
    %1468 = vmatprep.mubr.bf16.mxu0 0
    %1469 = vmatmul.mubr.bf16.gmra.mxu0 %v1340
    %v1470 = vpop.f32.mrf.mxu0
    %v1471 = vadd.f32 %v1362, %v1470
    %v1472 = vpop.f32.mrf.mxu0
    %v1473 = vpop.f32.mrf.mxu0
    %v1474 = vadd.f32 %v1362, %v1473
    %v1475 = vpop.f32.mrf.mxu0
    %1476 = vdwg.mxu0
    %v1477 = vld [vmem:[%s7] sm:$0x1]
    %v1478 = vld [vmem:[%s8] sm:$0x1]
    %1479 = vadd.xlane.f32.xlu0 %v1447
    %v1480 = vpop.xlane.xlu0 %1479
    %1481 = vadd.xlane.f32.xlu0 %v1450
    %v1482 = vpop.xlane.xlu0 %1481
    %1483 = vadd.xlane.f32.xlu0 %v1455
    %v1484 = vpop.xlane.xlu0 %1483
    %1485 = vadd.xlane.f32.xlu0 %v1458
    %v1486 = vpop.xlane.xlu0 %1485
    %1487 = vadd.xlane.f32.xlu0 %v1463
    %v1488 = vpop.xlane.xlu0 %1487
    %1489 = vadd.xlane.f32.xlu0 %v1466
    %v1490 = vpop.xlane.xlu0 %1489
    %1491 = vadd.xlane.f32.xlu0 %v1471
    %v1492 = vpop.xlane.xlu0 %1491
    %1493 = vadd.xlane.f32.xlu0 %v1474
    %v1494 = vpop.xlane.xlu0 %1493
    %v1495 = vmul.f32 %v1480, 0.03125
    %v1496 = vmul.f32 %v1482, 0.03125
    %v1497 = vmul.f32 %v1484, 0.03125
    %v1498 = vmul.f32 %v1486, 0.03125
    %v1499 = vmul.f32 %v1488, 0.03125
    %v1500 = vmul.f32 %v1490, 0.03125
    %v1501 = vmul.f32 %v1492, 0.03125
    %v1502 = vmul.f32 %v1494, 0.03125
    %v1503 = vmul.f32 %v1447, %v1447
    %v1504 = vmul.f32 %v1450, %v1450
    %v1505 = vmul.f32 %v1455, %v1455
    %v1506 = vmul.f32 %v1458, %v1458
    %v1507 = vmul.f32 %v1463, %v1463
    %v1508 = vmul.f32 %v1466, %v1466
    %v1509 = vmul.f32 %v1471, %v1471
    %v1510 = vmul.f32 %v1474, %v1474
    %1511 = vadd.xlane.f32.xlu0 %v1503
    %v1512 = vpop.xlane.xlu0 %1511
    %1513 = vadd.xlane.f32.xlu0 %v1504
    %v1514 = vpop.xlane.xlu0 %1513
    %1515 = vadd.xlane.f32.xlu0 %v1505
    %v1516 = vpop.xlane.xlu0 %1515
    %1517 = vadd.xlane.f32.xlu0 %v1506
    %v1518 = vpop.xlane.xlu0 %1517
    %1519 = vadd.xlane.f32.xlu0 %v1507
    %v1520 = vpop.xlane.xlu0 %1519
    %1521 = vadd.xlane.f32.xlu0 %v1508
    %v1522 = vpop.xlane.xlu0 %1521
    %1523 = vadd.xlane.f32.xlu0 %v1509
    %v1524 = vpop.xlane.xlu0 %1523
    %1525 = vadd.xlane.f32.xlu0 %v1510
    %v1526 = vpop.xlane.xlu0 %1525
    %v1527 = vmul.f32 %v1512, 0.03125
    %v1528 = vmul.f32 %v1514, 0.03125
    %v1529 = vmul.f32 %v1516, 0.03125
    %v1530 = vmul.f32 %v1518, 0.03125
    %v1531 = vmul.f32 %v1520, 0.03125
    %v1532 = vmul.f32 %v1522, 0.03125
    %v1533 = vmul.f32 %v1524, 0.03125
    %v1534 = vmul.f32 %v1526, 0.03125
    %v1535 = vmul.f32 %v1495, %v1495
    %v1536 = vmul.f32 %v1496, %v1496
    %v1537 = vmul.f32 %v1497, %v1497
    %v1538 = vmul.f32 %v1498, %v1498
    %v1539 = vmul.f32 %v1499, %v1499
    %v1540 = vmul.f32 %v1500, %v1500
    %v1541 = vmul.f32 %v1501, %v1501
    %v1542 = vmul.f32 %v1502, %v1502
    %v1543 = vsub.f32 %v1527, %v1535
    %v1544 = vsub.f32 %v1528, %v1536
    %v1545 = vsub.f32 %v1529, %v1537
    %v1546 = vsub.f32 %v1530, %v1538
    %v1547 = vsub.f32 %v1531, %v1539
    %v1548 = vsub.f32 %v1532, %v1540
    %v1549 = vsub.f32 %v1533, %v1541
    %v1550 = vsub.f32 %v1534, %v1542
    %v1551 = vmax.f32 %v1543, 0.0
    %v1552 = vmax.f32 %v1544, 0.0
    %v1553 = vmax.f32 %v1545, 0.0
    %v1554 = vmax.f32 %v1546, 0.0
    %v1555 = vmax.f32 %v1547, 0.0
    %v1556 = vmax.f32 %v1548, 0.0
    %v1557 = vmax.f32 %v1549, 0.0
    %v1558 = vmax.f32 %v1550, 0.0
    %v1559 = vsub.f32 %v1447, %v1495
    %v1560 = vsub.f32 %v1450, %v1496
    %v1561 = vsub.f32 %v1455, %v1497
    %v1562 = vsub.f32 %v1458, %v1498
    %v1563 = vsub.f32 %v1463, %v1499
    %v1564 = vsub.f32 %v1466, %v1500
    %v1565 = vsub.f32 %v1471, %v1501
    %v1566 = vsub.f32 %v1474, %v1502
    %v1567 = vadd.f32 %v1551, 1e-05
    %v1568 = vadd.f32 %v1552, 1e-05
    %v1569 = vadd.f32 %v1553, 1e-05
    %v1570 = vadd.f32 %v1554, 1e-05
    %v1571 = vadd.f32 %v1555, 1e-05
    %v1572 = vadd.f32 %v1556, 1e-05
    %v1573 = vadd.f32 %v1557, 1e-05
    %v1574 = vadd.f32 %v1558, 1e-05
    %v1575 = vrsqrt.pop %v1567
    %v1576 = vrsqrt.pop %v1568
    %v1577 = vrsqrt.pop %v1569
    %v1578 = vrsqrt.pop %v1570
    %v1579 = vrsqrt.pop %v1571
    %v1580 = vrsqrt.pop %v1572
    %v1581 = vrsqrt.pop %v1573
    %v1582 = vrsqrt.pop %v1574
    %v1583 = vmul.f32 %v1559, %v1575
    %v1584 = vmul.f32 %v1560, %v1576
    %v1585 = vmul.f32 %v1561, %v1577
    %v1586 = vmul.f32 %v1562, %v1578
    %v1587 = vmul.f32 %v1563, %v1579
    %v1588 = vmul.f32 %v1564, %v1580
    %v1589 = vmul.f32 %v1565, %v1581
    %v1590 = vmul.f32 %v1566, %v1582
    %v1592 = vlaneseq
    %v1593 = vshrl.u32 %v1592, 7
    %v1594 = vsub.s32 0, %v1593
    %v1595 = vrot.slane %v1477, %v1594
    %v1597 = vmul.f32 %v1583, %v1595
    %v1598 = vmul.f32 %v1584, %v1595
    %v1599 = vmul.f32 %v1585, %v1595
    %v1600 = vmul.f32 %v1586, %v1595
    %v1601 = vmul.f32 %v1587, %v1595
    %v1602 = vmul.f32 %v1588, %v1595
    %v1603 = vmul.f32 %v1589, %v1595
    %v1604 = vmul.f32 %v1590, %v1595
    %v1606 = vlaneseq
    %v1607 = vshrl.u32 %v1606, 7
    %v1608 = vsub.s32 0, %v1607
    %v1609 = vrot.slane %v1478, %v1608
    %v1611 = vadd.f32 %v1597, %v1609
    %v1612 = vadd.f32 %v1598, %v1609
    %v1613 = vadd.f32 %v1599, %v1609
    %v1614 = vadd.f32 %v1600, %v1609
    %v1615 = vadd.f32 %v1601, %v1609
    %v1616 = vadd.f32 %v1602, %v1609
    %v1617 = vadd.f32 %v1603, %v1609
    %v1618 = vadd.f32 %v1604, %v1609
    %v1619 = vmax.f32 %v1611, 0.0
    %v1620 = vmax.f32 %v1612, 0.0
    %v1621 = vmax.f32 %v1613, 0.0
    %v1622 = vmax.f32 %v1614, 0.0
    %v1623 = vmax.f32 %v1615, 0.0
    %v1624 = vmax.f32 %v1616, 0.0
    %v1625 = vmax.f32 %v1617, 0.0
    %v1626 = vmax.f32 %v1618, 0.0
    %v1627 = vpack.c.bf16 %v1620, %v1619
    %v1628 = vpack.c.bf16 %v1622, %v1621
    %v1629 = vpack.c.bf16 %v1624, %v1623
    %v1630 = vpack.c.bf16 %v1626, %v1625
    %v1631 = vld [vmem:[#allocation8] sm:$0xf]
    %v1632 = vld [vmem:[#allocation8 + $0x4] sm:$0xf]
    %v1633 = vld [vmem:[#allocation8 + $0x8] sm:$0xf]
    %v1634 = vld [vmem:[#allocation8 + $0xc] sm:$0xf]
    %v1635 = vld [vmem:[#allocation8 + $0x10] sm:$0xf]
    %v1636 = vld [vmem:[#allocation8 + $0x14] sm:$0xf]
    %v1637 = vld [vmem:[#allocation8 + $0x18] sm:$0xf]
    %v1638 = vld [vmem:[#allocation8 + $0x1c] sm:$0xf]
    %v1639 = vld [vmem:[#allocation8 + $0x20] sm:$0xf]
    %v1640 = vld [vmem:[#allocation8 + $0x24] sm:$0xf]
    %v1641 = vld [vmem:[#allocation8 + $0x28] sm:$0xf]
    %v1642 = vld [vmem:[#allocation8 + $0x2c] sm:$0xf]
    %v1643 = vld [vmem:[#allocation8 + $0x30] sm:$0xf]
    %v1644 = vld [vmem:[#allocation8 + $0x34] sm:$0xf]
    %v1645 = vld [vmem:[#allocation8 + $0x38] sm:$0xf]
    %v1646 = vld [vmem:[#allocation8 + $0x3c] sm:$0xf]
    %v1647 = vld [vmem:[%s10] sm:$0x1]
    %v1649 = vlaneseq
    %v1650 = vshrl.u32 %v1649, 7
    %v1651 = vsub.s32 0, %v1650
    %v1652 = vrot.slane %v1647, %v1651
    %v1670 = vunpack.c.l.b16 %v1631
    %v1671 = vunpack.c.l.b16 %v1632
    %v1672 = vunpack.c.l.b16 %v1633
    %v1673 = vunpack.c.l.b16 %v1634
    %v1674 = vunpack.c.l.b16 %v1635
    %v1675 = vunpack.c.l.b16 %v1636
    %v1676 = vunpack.c.l.b16 %v1637
    %v1677 = vunpack.c.l.b16 %v1638
    %v1678 = vunpack.c.l.b16 %v1639
    %v1679 = vunpack.c.l.b16 %v1640
    %v1680 = vunpack.c.l.b16 %v1641
    %v1681 = vunpack.c.l.b16 %v1642
    %v1682 = vunpack.c.l.b16 %v1643
    %v1683 = vunpack.c.l.b16 %v1644
    %v1684 = vunpack.c.l.b16 %v1645
    %v1685 = vunpack.c.l.b16 %v1646
    %v1686 = vpack.c.b16 %v1671, %v1670
    %v1687 = vpack.c.b16 %v1673, %v1672
    %v1688 = vpack.c.b16 %v1675, %v1674
    %v1689 = vpack.c.b16 %v1677, %v1676
    %v1690 = vpack.c.b16 %v1679, %v1678
    %v1691 = vpack.c.b16 %v1681, %v1680
    %v1692 = vpack.c.b16 %v1683, %v1682
    %v1693 = vpack.c.b16 %v1685, %v1684
    %1702 = vmatprep.subr.bf16.mxu0 0
    %1703 = vmatpush1.bf16.msra.mxu0 %v1693
    %1704 = vmatprep.subr.bf16.mxu0 0
    %1705 = vmatpush1.bf16.msra.mxu0 %v1692
    %1706 = vmatprep.subr.bf16.mxu0 0
    %1707 = vmatpush1.bf16.msra.mxu0 %v1691
    %1708 = vmatprep.subr.bf16.mxu0 0
    %1709 = vmatpush1.bf16.msra.mxu0 %v1690
    %1710 = vmatprep.subr.bf16.mxu0 0
    %1711 = vmatpush1.bf16.msra.mxu0 %v1689
    %1712 = vmatprep.subr.bf16.mxu0 0
    %1713 = vmatpush1.bf16.msra.mxu0 %v1688
    %1714 = vmatprep.subr.bf16.mxu0 0
    %1715 = vmatpush1.bf16.msra.mxu0 %v1687
    %1716 = vmatprep.subr.bf16.mxu0 0
    %1717 = vmatpush1.bf16.msra.mxu0 %v1686
    %1718 = vmatprep.subr.bf16.mxu0 0
    %1719 = vmatpush2.bf16.msra.mxu0 0
    %1720 = vmatprep.subr.bf16.mxu0 0
    %1721 = vmatpush2.bf16.msra.mxu0 0
    %1722 = vmatprep.subr.bf16.mxu0 0
    %1723 = vmatpush2.bf16.msra.mxu0 0
    %1724 = vmatprep.subr.bf16.mxu0 0
    %1725 = vmatpush2.bf16.msra.mxu0 0
    %1726 = vmatprep.subr.bf16.mxu0 0
    %1727 = vmatpush2.bf16.msra.mxu0 0
    %1728 = vmatprep.subr.bf16.mxu0 0
    %1729 = vmatpush2.bf16.msra.mxu0 0
    %1730 = vmatprep.subr.bf16.mxu0 0
    %1731 = vmatpush2.bf16.msra.mxu0 0
    %1732 = vmatprep.subr.bf16.mxu0 0
    %1733 = vmatpush2.bf16.msra.mxu0 0
    %1734 = vmatprep.mubr.bf16.mxu0 0
    %1735 = vmatmul.mubr.bf16.gmra.mxu0 %v1627
    %v1736 = vpop.f32.mrf.mxu0
    %v1737 = vadd.f32 %v1652, %v1736
    %v1738 = vpop.f32.mrf.mxu0
    %v1739 = vpop.f32.mrf.mxu0
    %v1740 = vadd.f32 %v1652, %v1739
    %v1741 = vpop.f32.mrf.mxu0
    %1742 = vmatprep.mubr.bf16.mxu0 0
    %1743 = vmatmul.mubr.bf16.gmra.mxu0 %v1628
    %v1744 = vpop.f32.mrf.mxu0
    %v1745 = vadd.f32 %v1652, %v1744
    %v1746 = vpop.f32.mrf.mxu0
    %v1747 = vpop.f32.mrf.mxu0
    %v1748 = vadd.f32 %v1652, %v1747
    %v1749 = vpop.f32.mrf.mxu0
    %1750 = vmatprep.mubr.bf16.mxu0 0
    %1751 = vmatmul.mubr.bf16.gmra.mxu0 %v1629
    %v1752 = vpop.f32.mrf.mxu0
    %v1753 = vadd.f32 %v1652, %v1752
    %v1754 = vpop.f32.mrf.mxu0
    %v1755 = vpop.f32.mrf.mxu0
    %v1756 = vadd.f32 %v1652, %v1755
    %v1757 = vpop.f32.mrf.mxu0
    %1758 = vmatprep.mubr.bf16.mxu0 0
    %1759 = vmatmul.mubr.bf16.gmra.mxu0 %v1630
    %v1760 = vpop.f32.mrf.mxu0
    %v1761 = vadd.f32 %v1652, %v1760
    %v1762 = vpop.f32.mrf.mxu0
    %v1763 = vpop.f32.mrf.mxu0
    %v1764 = vadd.f32 %v1652, %v1763
    %v1765 = vpop.f32.mrf.mxu0
    %1766 = vdwg.mxu0
    %1767 = vst [vmem:[#allocation10] sm:$0xff] %v1737
    %1768 = vst [vmem:[#allocation10 + $0x8] sm:$0xff] %v1740
    %1769 = vst [vmem:[#allocation10 + $0x10] sm:$0xff] %v1745
    %1770 = vst [vmem:[#allocation10 + $0x18] sm:$0xff] %v1748
    %1771 = vst [vmem:[#allocation10 + $0x20] sm:$0xff] %v1753
    %1772 = vst [vmem:[#allocation10 + $0x28] sm:$0xff] %v1756
    %1773 = vst [vmem:[#allocation10 + $0x30] sm:$0xff] %v1761
    %1774 = vst [vmem:[#allocation10 + $0x38] sm:$0xff] %v1764
    // Predicated region
    $region62: #{tpu_custom_call.1} parent=1 // pred_check
      _
    $region63: #{tpu_custom_call.1} parent=1 // pred_check_branch
      %1776 = sbr.rel (0) target = $region65
    $region64: #{tpu_custom_call.1} parent=1 // pred_region
      %s1778 = ssub.s32 1024, 1024
      %1779 = vsyncadd [#allocation4], %s1778
      %s1780 = sshll.u32 [#allocation10], 4
      %s1781 = int_to_ptr.vmem [resolvable:$true] %s1780
      %1786 = dma.vmem_to_hbm [thread:$0]  %s1781, 1024, %s11, [#allocation4], 128, 128, 8
    $region65: #{tpu_custom_call.1} parent=1 // pred_fallthru
      _
    // Predicated region
    $region66: #{tpu_custom_call.1} parent=1 // pred_check
      _
    $region67: #{tpu_custom_call.1} parent=1 // pred_check_branch
      %1788 = sbr.rel (0) target = $region69
    $region68: #{tpu_custom_call.1} parent=1 // pred_region
      %1789 = dma.done [#allocation4], 1024
    $region69: #{tpu_custom_call.1} parent=1 // pred_fallthru
      _
    %1790 = vsyncpa [#allocation3], 1
    %1791 = vsyncpa [#allocation6], 1
    %1792 = vsyncpa [#allocation9], 1
    %1793 = vsyncpa [#allocation4], 1

</llo_original>
